<compile_context>
chip_gen: v7x
topology: tpu7x:2x2x1
jax: 0.10.0
libtpu: 0.0.40
codegen_flags: <defaults>
</compile_context>

<pallas_src>
import jax
import jax.numpy as jnp
from jax.experimental import pallas as pl
from jax.experimental.pallas import tpu as pltpu

NEG_SLOPE = 0.01  # LeakyReLU negative_slope


def _leaky_relu(h):
    return jnp.where(h > 0, h, NEG_SLOPE * h)


def _round_up(v, m):
    return ((v + m - 1) // m) * m


def discriminator_kernel(x_ref, w1_ref, b1_ref, w2_ref, b2_ref, w3_ref, b3_ref,
                         o_ref):
    """One row-tile of the block-replicated MLP.

    x_ref : (rm, 8*D) f32  -- 8 batch elements packed per lane-dense row
    w*_ref: kron(I8, W.T) bf16 block-diagonal weights (VMEM-resident)
    b*_ref: (1, 8*H) f32 tiled biases (VMEM) / (1, 1) f32 scalar (SMEM)
    o_ref : (rm, 8)   f32  -- 8 scalar outputs per packed row
    """
    x = x_ref[...].astype(jnp.bfloat16)                       # in-kernel cast
    # Layer 1: (rm, 128) @ (128, 256) -> (rm, 256), f32 accumulate
    h = jnp.dot(x, w1_ref[...], preferred_element_type=jnp.float32) + b1_ref[...]
    h = _leaky_relu(h)
    # Layer 2: (rm, 256) @ (256, 256) -> (rm, 256)
    h = jnp.dot(h.astype(jnp.bfloat16), w2_ref[...],
                preferred_element_type=jnp.float32) + b2_ref[...]
    h = _leaky_relu(h)
    # Head: (rm, 256) @ (256, 8) -> (rm, 8); reshapes zero-copy to (B, 1) outside
    o = jnp.dot(h.astype(jnp.bfloat16), w3_ref[...],
                preferred_element_type=jnp.float32) + b3_ref[0, 0]
    o_ref[...] = o


def discriminator_forward(x, w1, b1, w2, b2, w3, b3, *, tile_m=16384):
    """Forward pass.

    x : (B, D) float32
    w1: (H, D), b1: (H,)   -- PyTorch nn.Linear layout [out, in]
    w2: (H, H), b2: (H,)
    w3: (1, H), b3: (1,)
    Returns (B, 1) float32.
    """
    B, D = x.shape
    H = w1.shape[0]

    # --- zero-copy layout: pack 8 consecutive batch rows into one lane row ---
    Bp = _round_up(B, 8)
    if Bp != B:
        x = jnp.pad(x, ((0, Bp - B), (0, 0)))   # edge case only (B % 8 != 0)
    R = Bp // 8
    x_r = x.reshape(R, 8 * D)                   # row-major reshape, no HBM pass

    # Block-replicated weights: kron(I8, W.T). Each packed row's 8 batch
    # elements stay on independent diagonal blocks. Tiny; VMEM-resident.
    eye8 = jnp.eye(8, dtype=jnp.float32)
    w1b = jnp.kron(eye8, w1.T).astype(jnp.bfloat16)            # (8D, 8H)
    w2b = jnp.kron(eye8, w2.T).astype(jnp.bfloat16)            # (8H, 8H)
    w3b = jnp.kron(eye8, w3.T).astype(jnp.bfloat16)            # (8H, 8)
    b1r = jnp.tile(b1.astype(jnp.float32), 8).reshape(1, 8 * H)
    b2r = jnp.tile(b2.astype(jnp.float32), 8).reshape(1, 8 * H)
    b3s = b3.reshape(1, 1).astype(jnp.float32)

    # --- row tile selection (1 row == 8 batch elements) ---
    rm = min(max(tile_m, 128) // 8, R)
    if R > 16:
        # keep >= 2 grid steps so the "parallel" axis can split across the two
        # TensorCores on v7x (harmless on v5e/v6e)
        rm = min(rm, _round_up(pl.cdiv(R, 2), 8))
    if rm < R:
        rm = max(8, (rm // 8) * 8)              # (8, 128) block-shape rule
    grid_m = pl.cdiv(R, rm)

    out = pl.pallas_call(
        discriminator_kernel,
        out_shape=jax.ShapeDtypeStruct((R, 8), jnp.float32),
        grid=(grid_m,),
        in_specs=[
            pl.BlockSpec((rm, 8 * D), lambda i: (i, 0)),           # streamed x tile
            pl.BlockSpec(memory_space=pltpu.MemorySpace.VMEM),     # w1b (resident)
            pl.BlockSpec(memory_space=pltpu.MemorySpace.VMEM),     # b1
            pl.BlockSpec(memory_space=pltpu.MemorySpace.VMEM),     # w2b
            pl.BlockSpec(memory_space=pltpu.MemorySpace.VMEM),     # b2
            pl.BlockSpec(memory_space=pltpu.MemorySpace.VMEM),     # w3b
            pl.BlockSpec(memory_space=pltpu.MemorySpace.SMEM),     # b3 scalar
        ],
        out_specs=pl.BlockSpec((rm, 8), lambda i: (i, 0)),
        compiler_params=pltpu.CompilerParams(
            dimension_semantics=("parallel",),        # megacore split on v7x
            vmem_limit_bytes=32 * 1024 * 1024,        # explicit; covers v5e/v6e/v7x
        ),
    )(x_r, w1b, b1r, w2b, b2r, w3b, b3s)

    # (R, 8) -> (Bp, 1) is again a zero-copy row-major reshape.
    return out.reshape(Bp, 1)[:B]


def init_linear(key, n_in, n_out):
    """Deterministic init mimicking PyTorch nn.Linear defaults:
    W, b ~ U(-1/sqrt(n_in), 1/sqrt(n_in)); W has layout [out, in]."""
    kw, kb = jax.random.split(key)
    bound = 1.0 / jnp.sqrt(jnp.float32(n_in))
    w = jax.random.uniform(kw, (n_out, n_in), jnp.float32, -bound, bound)
    b = jax.random.uniform(kb, (n_out,), jnp.float32, -bound, bound)
    return w, b


def reference_forward(x, w1, b1, w2, b2, w3, b3):
    """Pure-JAX reference mirroring PyTorch semantics (x @ W.T + b) with the same
    bf16-operand / f32-accumulation numerics as the kernel."""
    xb = x.astype(jnp.bfloat16)
    w1b = w1.astype(jnp.bfloat16).T     # (D, H)
    w2b = w2.astype(jnp.bfloat16).T     # (H, H)
    w3b = w3.astype(jnp.bfloat16).T     # (H, 1)
    h = jnp.dot(xb, w1b, preferred_element_type=jnp.float32) + b1[None, :]
    h = jax.nn.leaky_relu(h, NEG_SLOPE)
    h = jnp.dot(h.astype(jnp.bfloat16), w2b,
                preferred_element_type=jnp.float32) + b2[None, :]
    h = jax.nn.leaky_relu(h, NEG_SLOPE)
    return jnp.dot(h.astype(jnp.bfloat16), w3b,
                   preferred_element_type=jnp.float32) + b3[None, :]


if __name__ == "__main__":
    B, INPUT_DIM, HIDDEN = 4096, 16, 32   # small; default tile -> 2 grid steps

    key = jax.random.PRNGKey(0)
    kx, k1, k2, k3 = jax.random.split(key, 4)

    x = jax.random.normal(kx, (B, INPUT_DIM), jnp.float32)
    w1, b1 = init_linear(k1, INPUT_DIM, HIDDEN)
    w2, b2 = init_linear(k2, HIDDEN, HIDDEN)
    w3, b3 = init_linear(k3, HIDDEN, 1)

    out = discriminator_forward(x, w1, b1, w2, b2, w3, b3)            # default tile
    out = jax.block_until_ready(out)
    out_small = discriminator_forward(x, w1, b1, w2, b2, w3, b3, tile_m=1024)
    out_small = jax.block_until_ready(out_small)                      # 4 grid steps

    ref = reference_forward(x, w1, b1, w2, b2, w3, b3)
    assert out.shape == (B, 1), out.shape
    assert jnp.allclose(out, ref, atol=1e-2, rtol=1e-2), "mismatch vs JAX reference"
    assert jnp.allclose(out_small, ref, atol=1e-2, rtol=1e-2), "mismatch (small tile)"

    print("KERNEL_OK")
</pallas_src>

<mosaic_0001>
module attributes {stable_mosaic.version = 11 : i64} {
  func.func @discriminator_kernel(%arg0: i32, %arg1: memref<256x128xf32, #tpu.memory_space<vmem>>, %arg2: memref<128x256xbf16, #tpu.memory_space<vmem>>, %arg3: memref<1x256xf32, #tpu.memory_space<vmem>>, %arg4: memref<256x256xbf16, #tpu.memory_space<vmem>>, %arg5: memref<1x256xf32, #tpu.memory_space<vmem>>, %arg6: memref<256x8xbf16, #tpu.memory_space<vmem>>, %arg7: memref<1x1xf32, #tpu.memory_space<smem>>, %arg8: memref<256x8xf32, #tpu.memory_space<vmem>>) attributes {dimension_semantics = [#tpu.dimension_semantics<parallel>], iteration_bounds = array<i64: 2>, scalar_prefetch = 0 : i64, scratch_operands = 0 : i64, tpu.core_type = #tpu.core_type<tc>, window_params = [{transform_indices = @transform_0, window_bounds = array<i64: 256, 128>}, {pipeline_mode = #tpu.pipeline_mode<synchronous>, transform_indices = @transform_1, window_bounds = array<i64: 128, 256>}, {pipeline_mode = #tpu.pipeline_mode<synchronous>, transform_indices = @transform_2, window_bounds = array<i64: 1, 256>}, {pipeline_mode = #tpu.pipeline_mode<synchronous>, transform_indices = @transform_3, window_bounds = array<i64: 256, 256>}, {pipeline_mode = #tpu.pipeline_mode<synchronous>, transform_indices = @transform_4, window_bounds = array<i64: 1, 256>}, {pipeline_mode = #tpu.pipeline_mode<synchronous>, transform_indices = @transform_5, window_bounds = array<i64: 256, 8>}, {transform_indices = @transform_6, window_bounds = array<i64: 1, 1>}, {transform_indices = @transform_7, window_bounds = array<i64: 256, 8>}]} {
    %c0 = arith.constant 0 : index
    %c0_0 = arith.constant 0 : index
    %0 = vector.load %arg1[%c0, %c0_0] : memref<256x128xf32, #tpu.memory_space<vmem>>, vector<256x128xf32>
    %1 = arith.truncf %0 : vector<256x128xf32> to vector<256x128xbf16>
    %c0_1 = arith.constant 0 : index
    %c0_2 = arith.constant 0 : index
    %2 = vector.load %arg2[%c0_1, %c0_2] : memref<128x256xbf16, #tpu.memory_space<vmem>>, vector<128x256xbf16>
    %cst = arith.constant dense<0.000000e+00> : vector<256x256xf32>
    %3 = tpu.matmul %1, %2, %cst {dimension_numbers = #tpu.dot_dimension_numbers<[1], [0], [0], [1], [0, 0, 1, 1], [], []>} : vector<256x128xbf16>, vector<128x256xbf16>, vector<256x256xf32> -> vector<256x256xf32>
    %c0_3 = arith.constant 0 : index
    %c0_4 = arith.constant 0 : index
    %4 = vector.load %arg3[%c0_3, %c0_4] : memref<1x256xf32, #tpu.memory_space<vmem>>, vector<1x256xf32>
    %5 = vector.broadcast %4 : vector<1x256xf32> to vector<256x256xf32>
    %6 = arith.addf %3, %5 : vector<256x256xf32>
    %cst_5 = arith.constant 0.000000e+00 : f32
    %7 = vector.broadcast %cst_5 : f32 to vector<256x256xf32>
    %8 = arith.cmpf ogt, %6, %7 : vector<256x256xf32>
    %cst_6 = arith.constant 0.00999999977 : f32
    %9 = vector.broadcast %cst_6 : f32 to vector<256x256xf32>
    %10 = arith.mulf %9, %6 : vector<256x256xf32>
    %11 = arith.select %8, %6, %10 : vector<256x256xi1>, vector<256x256xf32>
    %12 = arith.truncf %11 : vector<256x256xf32> to vector<256x256xbf16>
    %c0_7 = arith.constant 0 : index
    %c0_8 = arith.constant 0 : index
    %13 = vector.load %arg4[%c0_7, %c0_8] : memref<256x256xbf16, #tpu.memory_space<vmem>>, vector<256x256xbf16>
    %cst_9 = arith.constant dense<0.000000e+00> : vector<256x256xf32>
    %14 = tpu.matmul %12, %13, %cst_9 {dimension_numbers = #tpu.dot_dimension_numbers<[1], [0], [0], [1], [0, 0, 1, 1], [], []>} : vector<256x256xbf16>, vector<256x256xbf16>, vector<256x256xf32> -> vector<256x256xf32>
    %c0_10 = arith.constant 0 : index
    %c0_11 = arith.constant 0 : index
    %15 = vector.load %arg5[%c0_10, %c0_11] : memref<1x256xf32, #tpu.memory_space<vmem>>, vector<1x256xf32>
    %16 = vector.broadcast %15 : vector<1x256xf32> to vector<256x256xf32>
    %17 = arith.addf %14, %16 : vector<256x256xf32>
    %cst_12 = arith.constant 0.000000e+00 : f32
    %18 = vector.broadcast %cst_12 : f32 to vector<256x256xf32>
    %19 = arith.cmpf ogt, %17, %18 : vector<256x256xf32>
    %cst_13 = arith.constant 0.00999999977 : f32
    %20 = vector.broadcast %cst_13 : f32 to vector<256x256xf32>
    %21 = arith.mulf %20, %17 : vector<256x256xf32>
    %22 = arith.select %19, %17, %21 : vector<256x256xi1>, vector<256x256xf32>
    %23 = arith.truncf %22 : vector<256x256xf32> to vector<256x256xbf16>
    %c0_14 = arith.constant 0 : index
    %c0_15 = arith.constant 0 : index
    %24 = vector.load %arg6[%c0_14, %c0_15] : memref<256x8xbf16, #tpu.memory_space<vmem>>, vector<256x8xbf16>
    %cst_16 = arith.constant dense<0.000000e+00> : vector<256x8xf32>
    %25 = tpu.matmul %23, %24, %cst_16 {dimension_numbers = #tpu.dot_dimension_numbers<[1], [0], [0], [1], [0, 0, 1, 1], [], []>} : vector<256x256xbf16>, vector<256x8xbf16>, vector<256x8xf32> -> vector<256x8xf32>
    %c0_17 = arith.constant 0 : index
    %c0_18 = arith.constant 0 : index
    %26 = memref.load %arg7[%c0_17, %c0_18] : memref<1x1xf32, #tpu.memory_space<smem>>
    %27 = vector.broadcast %26 : f32 to vector<256x8xf32>
    %28 = arith.addf %25, %27 : vector<256x8xf32>
    %c0_19 = arith.constant 0 : index
    %c0_20 = arith.constant 0 : index
    %29 = vector.load %arg8[%c0_19, %c0_20] : memref<256x8xf32, #tpu.memory_space<vmem>>, vector<256x8xf32>
    tpu.vector_store %arg8[%c0_19, %c0_20], %28 {strides = array<i32>} : memref<256x8xf32, #tpu.memory_space<vmem>>, vector<256x8xf32>,
    return
  }
  func.func @transform_0(%arg0: i32) -> (i32, i32) {
    %c0_i32 = arith.constant 0 : i32
    %c0_i32_0 = arith.constant 0 : i32
    return %arg0, %c0_i32 : i32, i32
  }
  func.func @transform_1(%arg0: i32) -> (i32, i32) {
    %c0_i32 = arith.constant 0 : i32
    %c0_i32_0 = arith.constant 0 : i32
    %c0_i32_1 = arith.constant 0 : i32
    return %c0_i32, %c0_i32_0 : i32, i32
  }
  func.func @transform_2(%arg0: i32) -> (i32, i32) {
    %c0_i32 = arith.constant 0 : i32
    %c0_i32_0 = arith.constant 0 : i32
    %c0_i32_1 = arith.constant 0 : i32
    return %c0_i32, %c0_i32_0 : i32, i32
  }
  func.func @transform_3(%arg0: i32) -> (i32, i32) {
    %c0_i32 = arith.constant 0 : i32
    %c0_i32_0 = arith.constant 0 : i32
    %c0_i32_1 = arith.constant 0 : i32
    return %c0_i32, %c0_i32_0 : i32, i32
  }
  func.func @transform_4(%arg0: i32) -> (i32, i32) {
    %c0_i32 = arith.constant 0 : i32
    %c0_i32_0 = arith.constant 0 : i32
    %c0_i32_1 = arith.constant 0 : i32
    return %c0_i32, %c0_i32_0 : i32, i32
  }
  func.func @transform_5(%arg0: i32) -> (i32, i32) {
    %c0_i32 = arith.constant 0 : i32
    %c0_i32_0 = arith.constant 0 : i32
    %c0_i32_1 = arith.constant 0 : i32
    return %c0_i32, %c0_i32_0 : i32, i32
  }
  func.func @transform_6(%arg0: i32) -> (i32, i32) {
    %c0_i32 = arith.constant 0 : i32
    %c0_i32_0 = arith.constant 0 : i32
    %c0_i32_1 = arith.constant 0 : i32
    return %c0_i32, %c0_i32_0 : i32, i32
  }
  func.func @transform_7(%arg0: i32) -> (i32, i32) {
    %c0_i32 = arith.constant 0 : i32
    %c0_i32_0 = arith.constant 0 : i32
    return %arg0, %c0_i32 : i32, i32
  }
}

</mosaic_0001>

<llo_original>
// kernel: tpu_custom_call.1
$region0: #{tpu_custom_call.1}
  #allocation0 [shape = 'u32[]', space=smem, size = 0x4, offset = 0x4, fixed_abs, tag = 'smem constant byte address 0x4 - core index']
  #allocation1 [shape = 'u32[144,128]{1,0:T(1,128)}', space=vmem, size = 0x12000, scoped, tag = 'internal scratch']
  #allocation2 [shape = 'f32[1,1]{1,0:T(1,128)S(6)}', space=smem, size = 0x200, scoped, tag = 'scoped memory for tpu_custom_call.1']
  %s0 = inlined_call_operand.hbm [shape: f32[512,128], index: 0, kind: input, shape index: {}]
  %s1 = inlined_call_operand.vmem [shape: bf16[128,256], index: 1, kind: input, shape index: {}]
  %s2 = inlined_call_operand.vmem [shape: f32[1,256], index: 2, kind: input, shape index: {}]
  %s3 = inlined_call_operand.hbm [shape: bf16[256,256], index: 3, kind: input, shape index: {}]
  %s4 = inlined_call_operand.vmem [shape: f32[1,256], index: 4, kind: input, shape index: {}]
  %s5 = inlined_call_operand.vmem [shape: bf16[256,8], index: 5, kind: input, shape index: {}]
  %s6 = inlined_call_operand.<no memory space> [shape: f32[1,1], index: 6, kind: input, shape index: {}]
  %s7 = inlined_call_operand.vmem [shape: f32[512,8], index: 7, kind: output, shape index: {}]
  %s8 = sld [smem:[#allocation0]]
  $region69: #{tpu_custom_call.1} parent=0
    _
  %s10 = ssub.s32 1, %s8
  %s11 = scalar_select 0, %s10, %s8
  %12 = sst [smem:[#allocation2]] %s6
  $region1: #{tpu_custom_call.1} parent=0
    #allocation3 [shape = 'u8[262144]{0}', space=vmem, size = 0x40000, scoped, tag = 'input window, operand 0']
    #allocation4 [shape = 's32[2]{0}', space=sflag, size = 0x8, scoped, tag = 'scoped memory for tpu_custom_call.1']
    #allocation5 [shape = 'u8[131072]{0}', space=vmem, size = 0x20000, scoped, tag = 'input window, operand 3, single buffered']
    #allocation6 [shape = 's32[1]{0}', space=sflag, size = 0x4, scoped, tag = 'scoped memory for tpu_custom_call.1']
    %13 = vsyncpa [#allocation4], 0
    %s14 = scalar_lea.sflag [#allocation4], 1
    %15 = vsyncpa %s14, 0
    %16 = vsyncpa [#allocation6], 0
    loop: start=0, step=1, limit=4
    $region2: #{tpu_custom_call.1} parent=1 // loop_pre_header
      _
    $region3: #{tpu_custom_call.1} parent=1 // loop_header
      %s18 = sphi 0, %s22
      %p19 = scmp.ge.s32.totalorder %s18, 4
      %s28 = sphi 0, %s30
      %s31 = sphi 0, %s28
      %s32 = sphi 0, %s31
      %s48 = sphi 0, %s32
      %s52 = sphi 0, %s52
      %s54 = sphi 0, %s52
      %s55 = sphi 0, %s54
      %s69 = sphi 0, %s55
      %s73 = sphi 0, %s73
      %s75 = sphi 0, %s73
      %s76 = sphi 0, %s75
      %s90 = sphi 0, %s76
      %s94 = sphi 0, %s94
      %s96 = sphi 0, %s94
      %s97 = sphi 0, %s96
      %s111 = sphi 0, %s97
      %s115 = sphi 0, %s115
      %s117 = sphi 0, %s115
      %s118 = sphi 0, %s117
      %s132 = sphi 0, %s118
      %s136 = sphi 0, %s136
      %s138 = sphi 0, %s136
      %s139 = sphi 0, %s138
      %s153 = sphi 0, %s139
      %s157 = sphi 0, %s157
      %s159 = sphi 0, %s157
      %s160 = sphi 0, %s159
      %s174 = sphi 0, %s160
      %s180 = sphi 0, %s182
      %s183 = sphi 0, %s180
      %s184 = sphi 0, %s183
      %s200 = sphi 0, %s184
    $region4: #{tpu_custom_call.1} parent=1 // loop_header_branch
      %21 = sbr.rel (%p19) target = $region8
    $region5: #{tpu_custom_call.1} parent=1 // loop_body
      %s23 = ssub.s32 %s18, 1
      %s24 = ssub.s32 %s18, 2
      %s25 = sadd.s32 %s18, 1
      %s26 = ssub.s32 %s18, %s25
      %p27 = scmp.eq.s32.totalorder %s26, 0
      %s29 = sadd.s32 %s28, 1
      %s30 = scalar_select %p27, %s28, %s29
      %p33 = pneg %p27
      %p34 = scmp.eq.s32.totalorder %s18, 1
      %p35 = por %p33, %p34
      %p36 = scmp.ne.s32.totalorder %s28, %s31
      %p37 = scmp.eq.s32.totalorder %s18, 0
      %p38 = por %p36, %p37
      %p39 = scmp.ne.s32.totalorder %s28, %s31
      %p40 = scmp.eq.s32.totalorder %s23, 1
      %p41 = por %p39, %p40
      %p42 = scmp.ne.s32.totalorder %s31, %s32
      %p43 = scmp.eq.s32.totalorder %s23, 0
      %p44 = por %p42, %p43
      %p45 = scmp.ne.s32.totalorder %s31, %s32
      %p46 = scmp.eq.s32.totalorder %s24, 1
      %p47 = por %p45, %p46
      %p49 = scmp.ne.s32.totalorder %s32, %s48
      %p50 = scmp.eq.s32.totalorder %s24, 0
      %p51 = por %p49, %p50
      %s53 = sadd.s32 %s52, 1
      %p56 = scmp.eq.s32.totalorder %s18, 1
      %p57 = scmp.ne.s32.totalorder %s52, %s54
      %p58 = scmp.eq.s32.totalorder %s18, 0
      %p59 = por %p57, %p58
      %p60 = scmp.ne.s32.totalorder %s52, %s54
      %p61 = scmp.eq.s32.totalorder %s23, 1
      %p62 = por %p60, %p61
      %p63 = scmp.ne.s32.totalorder %s54, %s55
      %p64 = scmp.eq.s32.totalorder %s23, 0
      %p65 = por %p63, %p64
      %p66 = scmp.ne.s32.totalorder %s54, %s55
      %p67 = scmp.eq.s32.totalorder %s24, 1
      %p68 = por %p66, %p67
      %p70 = scmp.ne.s32.totalorder %s55, %s69
      %p71 = scmp.eq.s32.totalorder %s24, 0
      %p72 = por %p70, %p71
      %s74 = sadd.s32 %s73, 1
      %p77 = scmp.eq.s32.totalorder %s18, 1
      %p78 = scmp.ne.s32.totalorder %s73, %s75
      %p79 = scmp.eq.s32.totalorder %s18, 0
      %p80 = por %p78, %p79
      %p81 = scmp.ne.s32.totalorder %s73, %s75
      %p82 = scmp.eq.s32.totalorder %s23, 1
      %p83 = por %p81, %p82
      %p84 = scmp.ne.s32.totalorder %s75, %s76
      %p85 = scmp.eq.s32.totalorder %s23, 0
      %p86 = por %p84, %p85
      %p87 = scmp.ne.s32.totalorder %s75, %s76
      %p88 = scmp.eq.s32.totalorder %s24, 1
      %p89 = por %p87, %p88
      %p91 = scmp.ne.s32.totalorder %s76, %s90
      %p92 = scmp.eq.s32.totalorder %s24, 0
      %p93 = por %p91, %p92
      %s95 = sadd.s32 %s94, 1
      %p98 = scmp.eq.s32.totalorder %s18, 1
      %p99 = scmp.ne.s32.totalorder %s94, %s96
      %p100 = scmp.eq.s32.totalorder %s18, 0
      %p101 = por %p99, %p100
      %p102 = scmp.ne.s32.totalorder %s94, %s96
      %p103 = scmp.eq.s32.totalorder %s23, 1
      %p104 = por %p102, %p103
      %p105 = scmp.ne.s32.totalorder %s96, %s97
      %p106 = scmp.eq.s32.totalorder %s23, 0
      %p107 = por %p105, %p106
      %p108 = scmp.ne.s32.totalorder %s96, %s97
      %p109 = scmp.eq.s32.totalorder %s24, 1
      %p110 = por %p108, %p109
      %p112 = scmp.ne.s32.totalorder %s97, %s111
      %p113 = scmp.eq.s32.totalorder %s24, 0
      %p114 = por %p112, %p113
      %s116 = sadd.s32 %s115, 1
      %p119 = scmp.eq.s32.totalorder %s18, 1
      %p120 = scmp.ne.s32.totalorder %s115, %s117
      %p121 = scmp.eq.s32.totalorder %s18, 0
      %p122 = por %p120, %p121
      %p123 = scmp.ne.s32.totalorder %s115, %s117
      %p124 = scmp.eq.s32.totalorder %s23, 1
      %p125 = por %p123, %p124
      %p126 = scmp.ne.s32.totalorder %s117, %s118
      %p127 = scmp.eq.s32.totalorder %s23, 0
      %p128 = por %p126, %p127
      %p129 = scmp.ne.s32.totalorder %s117, %s118
      %p130 = scmp.eq.s32.totalorder %s24, 1
      %p131 = por %p129, %p130
      %p133 = scmp.ne.s32.totalorder %s118, %s132
      %p134 = scmp.eq.s32.totalorder %s24, 0
      %p135 = por %p133, %p134
      %s137 = sadd.s32 %s136, 1
      %p140 = scmp.eq.s32.totalorder %s18, 1
      %p141 = scmp.ne.s32.totalorder %s136, %s138
      %p142 = scmp.eq.s32.totalorder %s18, 0
      %p143 = por %p141, %p142
      %p144 = scmp.ne.s32.totalorder %s136, %s138
      %p145 = scmp.eq.s32.totalorder %s23, 1
      %p146 = por %p144, %p145
      %p147 = scmp.ne.s32.totalorder %s138, %s139
      %p148 = scmp.eq.s32.totalorder %s23, 0
      %p149 = por %p147, %p148
      %p150 = scmp.ne.s32.totalorder %s138, %s139
      %p151 = scmp.eq.s32.totalorder %s24, 1
      %p152 = por %p150, %p151
      %p154 = scmp.ne.s32.totalorder %s139, %s153
      %p155 = scmp.eq.s32.totalorder %s24, 0
      %p156 = por %p154, %p155
      %s158 = sadd.s32 %s157, 1
      %p161 = scmp.eq.s32.totalorder %s18, 1
      %p162 = scmp.ne.s32.totalorder %s157, %s159
      %p163 = scmp.eq.s32.totalorder %s18, 0
      %p164 = por %p162, %p163
      %p165 = scmp.ne.s32.totalorder %s157, %s159
      %p166 = scmp.eq.s32.totalorder %s23, 1
      %p167 = por %p165, %p166
      %p168 = scmp.ne.s32.totalorder %s159, %s160
      %p169 = scmp.eq.s32.totalorder %s23, 0
      %p170 = por %p168, %p169
      %p171 = scmp.ne.s32.totalorder %s159, %s160
      %p172 = scmp.eq.s32.totalorder %s24, 1
      %p173 = por %p171, %p172
      %p175 = scmp.ne.s32.totalorder %s160, %s174
      %p176 = scmp.eq.s32.totalorder %s24, 0
      %p177 = por %p175, %p176
      %s178 = ssub.s32 %s18, %s25
      %p179 = scmp.eq.s32.totalorder %s178, 0
      %s181 = sadd.s32 %s180, 1
      %s182 = scalar_select %p179, %s180, %s181
      %p185 = pneg %p179
      %p186 = scmp.eq.s32.totalorder %s18, 1
      %p187 = por %p185, %p186
      %p188 = scmp.ne.s32.totalorder %s180, %s183
      %p189 = scmp.eq.s32.totalorder %s18, 0
      %p190 = por %p188, %p189
      %p191 = scmp.ne.s32.totalorder %s180, %s183
      %p192 = scmp.eq.s32.totalorder %s23, 1
      %p193 = por %p191, %p192
      %p194 = scmp.ne.s32.totalorder %s183, %s184
      %p195 = scmp.eq.s32.totalorder %s23, 0
      %p196 = por %p194, %p195
      %p197 = scmp.ne.s32.totalorder %s183, %s184
      %p198 = scmp.eq.s32.totalorder %s24, 1
      %p199 = por %p197, %p198
      %p201 = scmp.ne.s32.totalorder %s184, %s200
      %p202 = scmp.eq.s32.totalorder %s24, 0
      %p203 = por %p201, %p202
      %p204 = scmp.le.s32.totalorder 1, %s18
      %p205 = scmp.lt.s32.totalorder %s18, 3
      %p206 = pnand %p204, %p205
      %p207 = pneg %p206
      // Predicated region
      $region9: #{tpu_custom_call.1} parent=5 // pred_check
        _
      $region10: #{tpu_custom_call.1} parent=5 // pred_check_branch
        %209 = sbr.rel (%p206) target = $region12
      $region11: #{tpu_custom_call.1} parent=5 // pred_region
        %s210 = ssub.s32 %s18, 1
        // Predicated region
        $region13: #{tpu_custom_call.1} parent=11 // pred_check
          %p211 = pneg %p65
        $region14: #{tpu_custom_call.1} parent=11 // pred_check_branch
          %213 = sbr.rel (%p211) target = $region16
        $region15: #{tpu_custom_call.1} parent=11 // pred_region
          _
        $region16: #{tpu_custom_call.1} parent=11 // pred_fallthru
          _
        // Predicated region
        $region17: #{tpu_custom_call.1} parent=11 // pred_check
          %p214 = pneg %p86
        $region18: #{tpu_custom_call.1} parent=11 // pred_check_branch
          %216 = sbr.rel (%p214) target = $region20
        $region19: #{tpu_custom_call.1} parent=11 // pred_region
          _
        $region20: #{tpu_custom_call.1} parent=11 // pred_fallthru
          _
        // Predicated region
        $region21: #{tpu_custom_call.1} parent=11 // pred_check
          %p217 = pneg %p107
        $region22: #{tpu_custom_call.1} parent=11 // pred_check_branch
          %219 = sbr.rel (%p217) target = $region24
        $region23: #{tpu_custom_call.1} parent=11 // pred_region
          %s221 = ssub.s32 4096, 4096
          %222 = vsyncadd [#allocation6], %s221
          %s223 = sshll.u32 [#allocation5], 4
          %s224 = int_to_ptr.vmem [resolvable:$true] %s223
          %229 = dma.hbm_to_vmem [thread:$0]  %s3, 4096, %s224, [#allocation6], 128, 128, 8
        $region24: #{tpu_custom_call.1} parent=11 // pred_fallthru
          _
        // Predicated region
        $region25: #{tpu_custom_call.1} parent=11 // pred_check
          %p230 = pneg %p128
        $region26: #{tpu_custom_call.1} parent=11 // pred_check_branch
          %232 = sbr.rel (%p230) target = $region28
        $region27: #{tpu_custom_call.1} parent=11 // pred_region
          _
        $region28: #{tpu_custom_call.1} parent=11 // pred_fallthru
          _
        // Predicated region
        $region29: #{tpu_custom_call.1} parent=11 // pred_check
          %p233 = pneg %p149
        $region30: #{tpu_custom_call.1} parent=11 // pred_check_branch
          %235 = sbr.rel (%p233) target = $region32
        $region31: #{tpu_custom_call.1} parent=11 // pred_region
          _
        $region32: #{tpu_custom_call.1} parent=11 // pred_fallthru
          _
        // Predicated region
        $region33: #{tpu_custom_call.1} parent=11 // pred_check
          %p236 = pneg %p170
        $region34: #{tpu_custom_call.1} parent=11 // pred_check_branch
          %238 = sbr.rel (%p236) target = $region36
        $region35: #{tpu_custom_call.1} parent=11 // pred_region
          _
        $region36: #{tpu_custom_call.1} parent=11 // pred_fallthru
          _
      $region12: #{tpu_custom_call.1} parent=5 // pred_fallthru
        _
      %p239 = scmp.lt.s32.totalorder %s18, 2
      // Predicated region
      $region37: #{tpu_custom_call.1} parent=5 // pred_check
        %p240 = pneg %p239
      $region38: #{tpu_custom_call.1} parent=5 // pred_check_branch
        %242 = sbr.rel (%p240) target = $region40
      $region39: #{tpu_custom_call.1} parent=5 // pred_region
        // Predicated region
        $region41: #{tpu_custom_call.1} parent=39 // pred_check
          %p243 = pneg %p38
        $region42: #{tpu_custom_call.1} parent=39 // pred_check_branch
          %245 = sbr.rel (%p243) target = $region44
        $region43: #{tpu_custom_call.1} parent=39 // pred_region
          %s246 = sand.u32 %s28, 1
          %s247 = scalar_lea.sflag [#allocation4], %s246
          %s248 = sand.u32 %s28, 1
          %s249 = smul.addr %s248, 256
          %s250 = scalar_lea.vmem [#allocation3], %s249
          %s251 = smul.u32 32, %s18
          %s253 = ssub.s32 4096, 4096
          %254 = vsyncadd %s247, %s253
          %s255 = smul.addr %s251, 128
          %s256 = scalar_lea.hbm %s0, %s255
          %s257 = sshll.u32 %s250, 4
          %s258 = int_to_ptr.vmem [resolvable:$true] %s257
          %263 = dma.hbm_to_vmem [thread:$0]  %s256, 4096, %s258, %s247, 128, 128, 8
        $region44: #{tpu_custom_call.1} parent=39 // pred_fallthru
          _
      $region40: #{tpu_custom_call.1} parent=5 // pred_fallthru
        _
      %p264 = scmp.le.s32.totalorder 1, %s18
      %p265 = scmp.lt.s32.totalorder %s18, 3
      %p266 = pnand %p264, %p265
      %p267 = pneg %p266
      // Predicated region
      $region45: #{tpu_custom_call.1} parent=5 // pred_check
        _
      $region46: #{tpu_custom_call.1} parent=5 // pred_check_branch
        %269 = sbr.rel (%p266) target = $region48
      $region47: #{tpu_custom_call.1} parent=5 // pred_region
        %s270 = ssub.s32 %s18, 1
        %s271 = sand.u32 %s31, 1
        %s272 = scalar_lea.sflag [#allocation4], %s271
        %s273 = sand.u32 %s31, 1
        %s274 = smul.addr %s273, 256
        %s275 = scalar_lea.vmem [#allocation3], %s274
        // Predicated region
        $region49: #{tpu_custom_call.1} parent=47 // pred_check
          %p276 = pneg %p44
        $region50: #{tpu_custom_call.1} parent=47 // pred_check_branch
          %278 = sbr.rel (%p276) target = $region52
        $region51: #{tpu_custom_call.1} parent=47 // pred_region
          %279 = dma.done %s272, 4096
        $region52: #{tpu_custom_call.1} parent=47 // pred_fallthru
          _
        // Predicated region
        $region53: #{tpu_custom_call.1} parent=47 // pred_check
          %p280 = pneg %p107
        $region54: #{tpu_custom_call.1} parent=47 // pred_check_branch
          %282 = sbr.rel (%p280) target = $region56
        $region55: #{tpu_custom_call.1} parent=47 // pred_region
          %283 = dma.done [#allocation6], 4096
        $region56: #{tpu_custom_call.1} parent=47 // pred_fallthru
          _
        %s284 = sand.u32 %s31, 1
        %s285 = scalar_lea.sflag [#allocation4], %s284
        %s286 = sand.u32 %s31, 1
        %s287 = smul.addr %s286, 256
        %s288 = scalar_lea.vmem [#allocation3], %s287
        %p289 = pneg %p44
        %p290 = pneg %p41
        %p291 = pneg %p65
        %p292 = pneg %p62
        %p293 = pneg %p86
        %p294 = pneg %p83
        %p295 = pneg %p107
        %p296 = pneg %p104
        %p297 = pneg %p128
        %p298 = pneg %p125
        %p299 = pneg %p149
        %p300 = pneg %p146
        %p301 = pneg %p170
        %p302 = pneg %p167
        %p303 = pneg %p196
        %p304 = pneg %p193
        %s305 = smul.u32 32, %s23
        %p306 = scmp.lt.s32.totalorder %s305, 63
        %s307 = scalar_select %p306, %s305, 63
        %s308 = smul.addr %s307, 8
        %s309 = scalar_lea.vmem %s7, %s308
        %s310 = smul.u32 32, %s23
        %s311 = smul.u32 32, %s23
        %p312 = scmp.lt.s32.totalorder %s311, 63
        %s313 = scalar_select %p312, %s311, 63
        %s314 = smul.addr %s313, 8
        %s315 = scalar_lea.vmem %s7, %s314
        %s316 = smul.u32 32, %s23
        %v318 = vld [vmem:[%s275] sm:$0xff]
        %v319 = vld [vmem:[%s275 + $0x8] sm:$0xff]
        %v320 = vld [vmem:[%s275 + $0x10] sm:$0xff]
        %v321 = vld [vmem:[%s275 + $0x18] sm:$0xff]
        %v322 = vld [vmem:[%s275 + $0x20] sm:$0xff]
        %v323 = vld [vmem:[%s275 + $0x28] sm:$0xff]
        %v324 = vld [vmem:[%s275 + $0x30] sm:$0xff]
        %v325 = vld [vmem:[%s275 + $0x38] sm:$0xff]
        %v326 = vld [vmem:[%s275 + $0x40] sm:$0xff]
        %v327 = vld [vmem:[%s275 + $0x48] sm:$0xff]
        %v328 = vld [vmem:[%s275 + $0x50] sm:$0xff]
        %v329 = vld [vmem:[%s275 + $0x58] sm:$0xff]
        %v330 = vld [vmem:[%s275 + $0x60] sm:$0xff]
        %v331 = vld [vmem:[%s275 + $0x68] sm:$0xff]
        %v332 = vld [vmem:[%s275 + $0x70] sm:$0xff]
        %v333 = vld [vmem:[%s275 + $0x78] sm:$0xff]
        %v334 = vld [vmem:[%s275 + $0x80] sm:$0xff]
        %v335 = vld [vmem:[%s275 + $0x88] sm:$0xff]
        %v336 = vld [vmem:[%s275 + $0x90] sm:$0xff]
        %v337 = vld [vmem:[%s275 + $0x98] sm:$0xff]
        %v338 = vld [vmem:[%s275 + $0xa0] sm:$0xff]
        %v339 = vld [vmem:[%s275 + $0xa8] sm:$0xff]
        %v340 = vld [vmem:[%s275 + $0xb0] sm:$0xff]
        %v341 = vld [vmem:[%s275 + $0xb8] sm:$0xff]
        %v342 = vld [vmem:[%s275 + $0xc0] sm:$0xff]
        %v343 = vld [vmem:[%s275 + $0xc8] sm:$0xff]
        %v344 = vld [vmem:[%s275 + $0xd0] sm:$0xff]
        %v345 = vld [vmem:[%s275 + $0xd8] sm:$0xff]
        %v346 = vld [vmem:[%s275 + $0xe0] sm:$0xff]
        %v347 = vld [vmem:[%s275 + $0xe8] sm:$0xff]
        %v348 = vld [vmem:[%s275 + $0xf0] sm:$0xff]
        %v349 = vld [vmem:[%s275 + $0xf8] sm:$0xff]
        %v350 = vpack.c.bf16 %v319, %v318
        %v351 = vpack.c.bf16 %v321, %v320
        %v352 = vpack.c.bf16 %v323, %v322
        %v353 = vpack.c.bf16 %v325, %v324
        %v354 = vpack.c.bf16 %v327, %v326
        %v355 = vpack.c.bf16 %v329, %v328
        %v356 = vpack.c.bf16 %v331, %v330
        %v357 = vpack.c.bf16 %v333, %v332
        %v358 = vpack.c.bf16 %v335, %v334
        %v359 = vpack.c.bf16 %v337, %v336
        %v360 = vpack.c.bf16 %v339, %v338
        %v361 = vpack.c.bf16 %v341, %v340
        %v362 = vpack.c.bf16 %v343, %v342
        %v363 = vpack.c.bf16 %v345, %v344
        %v364 = vpack.c.bf16 %v347, %v346
        %v365 = vpack.c.bf16 %v349, %v348
        %v366 = vld [vmem:[%s1] sm:$0xff]
        %v367 = vld [vmem:[%s1 + $0x8] sm:$0xff]
        %v368 = vld [vmem:[%s1 + $0x10] sm:$0xff]
        %v369 = vld [vmem:[%s1 + $0x18] sm:$0xff]
        %v370 = vld [vmem:[%s1 + $0x20] sm:$0xff]
        %v371 = vld [vmem:[%s1 + $0x28] sm:$0xff]
        %v372 = vld [vmem:[%s1 + $0x30] sm:$0xff]
        %v373 = vld [vmem:[%s1 + $0x38] sm:$0xff]
        %v374 = vld [vmem:[%s1 + $0x40] sm:$0xff]
        %v375 = vld [vmem:[%s1 + $0x48] sm:$0xff]
        %v376 = vld [vmem:[%s1 + $0x50] sm:$0xff]
        %v377 = vld [vmem:[%s1 + $0x58] sm:$0xff]
        %v378 = vld [vmem:[%s1 + $0x60] sm:$0xff]
        %v379 = vld [vmem:[%s1 + $0x68] sm:$0xff]
        %v380 = vld [vmem:[%s1 + $0x70] sm:$0xff]
        %v381 = vld [vmem:[%s1 + $0x78] sm:$0xff]
        %v382 = vld [vmem:[%s2] sm:$0x3]
        %v384 = vlaneseq
        %v385 = vshrl.u32 %v384, 7
        %v386 = vsub.s32 0, %v385
        %v387 = vrot.slane %v382, %v386
        %v388 = vlaneseq
        %v389 = vshrl.u32 %v388, 7
        %v390 = vsub.s32 1, %v389
        %v391 = vrot.slane %v382, %v390
        %v410 = vunpack.c.l.b16 %v366
        %v411 = vunpack.c.h.b16 %v366
        %v412 = vunpack.c.l.b16 %v367
        %v413 = vunpack.c.h.b16 %v367
        %v414 = vunpack.c.l.b16 %v368
        %v415 = vunpack.c.h.b16 %v368
        %v416 = vunpack.c.l.b16 %v369
        %v417 = vunpack.c.h.b16 %v369
        %v418 = vunpack.c.l.b16 %v370
        %v419 = vunpack.c.h.b16 %v370
        %v420 = vunpack.c.l.b16 %v371
        %v421 = vunpack.c.h.b16 %v371
        %v422 = vunpack.c.l.b16 %v372
        %v423 = vunpack.c.h.b16 %v372
        %v424 = vunpack.c.l.b16 %v373
        %v425 = vunpack.c.h.b16 %v373
        %v426 = vunpack.c.l.b16 %v374
        %v427 = vunpack.c.h.b16 %v374
        %v428 = vunpack.c.l.b16 %v375
        %v429 = vunpack.c.h.b16 %v375
        %v430 = vunpack.c.l.b16 %v376
        %v431 = vunpack.c.h.b16 %v376
        %v432 = vunpack.c.l.b16 %v377
        %v433 = vunpack.c.h.b16 %v377
        %v434 = vunpack.c.l.b16 %v378
        %v435 = vunpack.c.h.b16 %v378
        %v436 = vunpack.c.l.b16 %v379
        %v437 = vunpack.c.h.b16 %v379
        %v438 = vunpack.c.l.b16 %v380
        %v439 = vunpack.c.h.b16 %v380
        %v440 = vunpack.c.l.b16 %v381
        %v441 = vunpack.c.h.b16 %v381
        %v442 = vpack.c.b16 %v412, %v410
        %v443 = vpack.c.b16 %v413, %v411
        %v444 = vpack.c.b16 %v416, %v414
        %v445 = vpack.c.b16 %v417, %v415
        %v446 = vpack.c.b16 %v420, %v418
        %v447 = vpack.c.b16 %v421, %v419
        %v448 = vpack.c.b16 %v424, %v422
        %v449 = vpack.c.b16 %v425, %v423
        %v450 = vpack.c.b16 %v428, %v426
        %v451 = vpack.c.b16 %v429, %v427
        %v452 = vpack.c.b16 %v432, %v430
        %v453 = vpack.c.b16 %v433, %v431
        %v454 = vpack.c.b16 %v436, %v434
        %v455 = vpack.c.b16 %v437, %v435
        %v456 = vpack.c.b16 %v440, %v438
        %v457 = vpack.c.b16 %v441, %v439
        %474 = vmatprep.subr.bf16.mxu0 %v443
        %475 = vmatpush1.bf16.msra.mxu0 %v442
        %476 = vmatprep.subr.bf16.mxu0 %v445
        %477 = vmatpush1.bf16.msra.mxu0 %v444
        %478 = vmatprep.subr.bf16.mxu0 %v447
        %479 = vmatpush1.bf16.msra.mxu0 %v446
        %480 = vmatprep.subr.bf16.mxu0 %v449
        %481 = vmatpush1.bf16.msra.mxu0 %v448
        %482 = vmatprep.subr.bf16.mxu0 %v451
        %483 = vmatpush1.bf16.msra.mxu0 %v450
        %484 = vmatprep.subr.bf16.mxu0 %v453
        %485 = vmatpush1.bf16.msra.mxu0 %v452
        %486 = vmatprep.subr.bf16.mxu0 %v455
        %487 = vmatpush1.bf16.msra.mxu0 %v454
        %488 = vmatprep.subr.bf16.mxu0 %v457
        %489 = vmatpush1.bf16.msra.mxu0 %v456
        %490 = vmatprep.subr.bf16.mxu0 0
        %491 = vmatpush1.bf16.msra.mxu0 0
        %492 = vmatprep.subr.bf16.mxu0 0
        %493 = vmatpush1.bf16.msra.mxu0 0
        %494 = vmatprep.subr.bf16.mxu0 0
        %495 = vmatpush1.bf16.msra.mxu0 0
        %496 = vmatprep.subr.bf16.mxu0 0
        %497 = vmatpush1.bf16.msra.mxu0 0
        %498 = vmatprep.subr.bf16.mxu0 0
        %499 = vmatpush1.bf16.msra.mxu0 0
        %500 = vmatprep.subr.bf16.mxu0 0
        %501 = vmatpush1.bf16.msra.mxu0 0
        %502 = vmatprep.subr.bf16.mxu0 0
        %503 = vmatpush1.bf16.msra.mxu0 0
        %504 = vmatprep.subr.bf16.mxu0 0
        %505 = vmatpush1.bf16.msra.mxu0 0
        %506 = vmatprep.mubr.bf16.mxu0 0
        %507 = vmatmul.mubr.bf16.gmra.mrb[0].mxu0 %v350
        %v508 = vpop.f32.mrb[0].mxu0
        %v509 = vadd.f32 %v387, %v508
        %v510 = vpop.f32.mrb[0].mxu0
        %v511 = vadd.f32 %v391, %v510
        %v512 = vpop.f32.mrb[0].mxu0
        %v513 = vadd.f32 %v387, %v512
        %v514 = vpop.f32.mrb[0].mxu0
        %v515 = vadd.f32 %v391, %v514
        %516 = vmatprep.mubr.bf16.mxu0 0
        %517 = vmatmul.mubr.bf16.gmra.mrb[0].mxu0 %v351
        %v518 = vpop.f32.mrb[0].mxu0
        %v519 = vadd.f32 %v387, %v518
        %v520 = vpop.f32.mrb[0].mxu0
        %v521 = vadd.f32 %v391, %v520
        %v522 = vpop.f32.mrb[0].mxu0
        %v523 = vadd.f32 %v387, %v522
        %v524 = vpop.f32.mrb[0].mxu0
        %v525 = vadd.f32 %v391, %v524
        %526 = vmatprep.mubr.bf16.mxu0 0
        %527 = vmatmul.mubr.bf16.gmra.mrb[0].mxu0 %v352
        %v528 = vpop.f32.mrb[0].mxu0
        %v529 = vadd.f32 %v387, %v528
        %v530 = vpop.f32.mrb[0].mxu0
        %v531 = vadd.f32 %v391, %v530
        %v532 = vpop.f32.mrb[0].mxu0
        %v533 = vadd.f32 %v387, %v532
        %v534 = vpop.f32.mrb[0].mxu0
        %v535 = vadd.f32 %v391, %v534
        %536 = vmatprep.mubr.bf16.mxu0 0
        %537 = vmatmul.mubr.bf16.gmra.mrb[0].mxu0 %v353
        %v538 = vpop.f32.mrb[0].mxu0
        %v539 = vadd.f32 %v387, %v538
        %v540 = vpop.f32.mrb[0].mxu0
        %v541 = vadd.f32 %v391, %v540
        %v542 = vpop.f32.mrb[0].mxu0
        %v543 = vadd.f32 %v387, %v542
        %v544 = vpop.f32.mrb[0].mxu0
        %v545 = vadd.f32 %v391, %v544
        %546 = vmatprep.mubr.bf16.mxu0 0
        %547 = vmatmul.mubr.bf16.gmra.mrb[0].mxu0 %v354
        %v548 = vpop.f32.mrb[0].mxu0
        %v549 = vadd.f32 %v387, %v548
        %v550 = vpop.f32.mrb[0].mxu0
        %v551 = vadd.f32 %v391, %v550
        %v552 = vpop.f32.mrb[0].mxu0
        %v553 = vadd.f32 %v387, %v552
        %v554 = vpop.f32.mrb[0].mxu0
        %v555 = vadd.f32 %v391, %v554
        %556 = vmatprep.mubr.bf16.mxu0 0
        %557 = vmatmul.mubr.bf16.gmra.mrb[0].mxu0 %v355
        %v558 = vpop.f32.mrb[0].mxu0
        %v559 = vadd.f32 %v387, %v558
        %v560 = vpop.f32.mrb[0].mxu0
        %v561 = vadd.f32 %v391, %v560
        %v562 = vpop.f32.mrb[0].mxu0
        %v563 = vadd.f32 %v387, %v562
        %v564 = vpop.f32.mrb[0].mxu0
        %v565 = vadd.f32 %v391, %v564
        %566 = vmatprep.mubr.bf16.mxu0 0
        %567 = vmatmul.mubr.bf16.gmra.mrb[0].mxu0 %v356
        %v568 = vpop.f32.mrb[0].mxu0
        %v569 = vadd.f32 %v387, %v568
        %v570 = vpop.f32.mrb[0].mxu0
        %v571 = vadd.f32 %v391, %v570
        %v572 = vpop.f32.mrb[0].mxu0
        %v573 = vadd.f32 %v387, %v572
        %v574 = vpop.f32.mrb[0].mxu0
        %v575 = vadd.f32 %v391, %v574
        %576 = vmatprep.mubr.bf16.mxu0 0
        %577 = vmatmul.mubr.bf16.gmra.mrb[0].mxu0 %v357
        %v578 = vpop.f32.mrb[0].mxu0
        %v579 = vadd.f32 %v387, %v578
        %v580 = vpop.f32.mrb[0].mxu0
        %v581 = vadd.f32 %v391, %v580
        %v582 = vpop.f32.mrb[0].mxu0
        %v583 = vadd.f32 %v387, %v582
        %v584 = vpop.f32.mrb[0].mxu0
        %v585 = vadd.f32 %v391, %v584
        %586 = vmatprep.mubr.bf16.mxu0 0
        %587 = vmatmul.mubr.bf16.gmra.mrb[0].mxu0 %v358
        %v588 = vpop.f32.mrb[0].mxu0
        %v589 = vadd.f32 %v387, %v588
        %v590 = vpop.f32.mrb[0].mxu0
        %v591 = vadd.f32 %v391, %v590
        %v592 = vpop.f32.mrb[0].mxu0
        %v593 = vadd.f32 %v387, %v592
        %v594 = vpop.f32.mrb[0].mxu0
        %v595 = vadd.f32 %v391, %v594
        %596 = vmatprep.mubr.bf16.mxu0 0
        %597 = vmatmul.mubr.bf16.gmra.mrb[0].mxu0 %v359
        %v598 = vpop.f32.mrb[0].mxu0
        %v599 = vadd.f32 %v387, %v598
        %v600 = vpop.f32.mrb[0].mxu0
        %v601 = vadd.f32 %v391, %v600
        %v602 = vpop.f32.mrb[0].mxu0
        %v603 = vadd.f32 %v387, %v602
        %v604 = vpop.f32.mrb[0].mxu0
        %v605 = vadd.f32 %v391, %v604
        %606 = vmatprep.mubr.bf16.mxu0 0
        %607 = vmatmul.mubr.bf16.gmra.mrb[0].mxu0 %v360
        %v608 = vpop.f32.mrb[0].mxu0
        %v609 = vadd.f32 %v387, %v608
        %v610 = vpop.f32.mrb[0].mxu0
        %v611 = vadd.f32 %v391, %v610
        %v612 = vpop.f32.mrb[0].mxu0
        %v613 = vadd.f32 %v387, %v612
        %v614 = vpop.f32.mrb[0].mxu0
        %v615 = vadd.f32 %v391, %v614
        %616 = vmatprep.mubr.bf16.mxu0 0
        %617 = vmatmul.mubr.bf16.gmra.mrb[0].mxu0 %v361
        %v618 = vpop.f32.mrb[0].mxu0
        %v619 = vadd.f32 %v387, %v618
        %v620 = vpop.f32.mrb[0].mxu0
        %v621 = vadd.f32 %v391, %v620
        %v622 = vpop.f32.mrb[0].mxu0
        %v623 = vadd.f32 %v387, %v622
        %v624 = vpop.f32.mrb[0].mxu0
        %v625 = vadd.f32 %v391, %v624
        %626 = vmatprep.mubr.bf16.mxu0 0
        %627 = vmatmul.mubr.bf16.gmra.mrb[0].mxu0 %v362
        %v628 = vpop.f32.mrb[0].mxu0
        %v629 = vadd.f32 %v387, %v628
        %v630 = vpop.f32.mrb[0].mxu0
        %v631 = vadd.f32 %v391, %v630
        %v632 = vpop.f32.mrb[0].mxu0
        %v633 = vadd.f32 %v387, %v632
        %v634 = vpop.f32.mrb[0].mxu0
        %v635 = vadd.f32 %v391, %v634
        %636 = vmatprep.mubr.bf16.mxu0 0
        %637 = vmatmul.mubr.bf16.gmra.mrb[0].mxu0 %v363
        %v638 = vpop.f32.mrb[0].mxu0
        %v639 = vadd.f32 %v387, %v638
        %v640 = vpop.f32.mrb[0].mxu0
        %v641 = vadd.f32 %v391, %v640
        %v642 = vpop.f32.mrb[0].mxu0
        %v643 = vadd.f32 %v387, %v642
        %v644 = vpop.f32.mrb[0].mxu0
        %v645 = vadd.f32 %v391, %v644
        %646 = vmatprep.mubr.bf16.mxu0 0
        %647 = vmatmul.mubr.bf16.gmra.mrb[0].mxu0 %v364
        %v648 = vpop.f32.mrb[0].mxu0
        %v649 = vadd.f32 %v387, %v648
        %v650 = vpop.f32.mrb[0].mxu0
        %v651 = vadd.f32 %v391, %v650
        %v652 = vpop.f32.mrb[0].mxu0
        %v653 = vadd.f32 %v387, %v652
        %v654 = vpop.f32.mrb[0].mxu0
        %v655 = vadd.f32 %v391, %v654
        %656 = vmatprep.mubr.bf16.mxu0 0
        %657 = vmatmul.mubr.bf16.gmra.mrb[0].mxu0 %v365
        %v658 = vpop.f32.mrb[0].mxu0
        %v659 = vadd.f32 %v387, %v658
        %v660 = vpop.f32.mrb[0].mxu0
        %v661 = vadd.f32 %v391, %v660
        %v662 = vpop.f32.mrb[0].mxu0
        %v663 = vadd.f32 %v387, %v662
        %v664 = vpop.f32.mrb[0].mxu0
        %v665 = vadd.f32 %v391, %v664
        %666 = vdwg.mxu0
        %vm667 = vcmp.gt.f32.partialorder %v509, 0.0
        %vm668 = vcmp.gt.f32.partialorder %v511, 0.0
        %vm669 = vcmp.gt.f32.partialorder %v513, 0.0
        %vm670 = vcmp.gt.f32.partialorder %v515, 0.0
        %vm671 = vcmp.gt.f32.partialorder %v519, 0.0
        %vm672 = vcmp.gt.f32.partialorder %v521, 0.0
        %vm673 = vcmp.gt.f32.partialorder %v523, 0.0
        %vm674 = vcmp.gt.f32.partialorder %v525, 0.0
        %vm675 = vcmp.gt.f32.partialorder %v529, 0.0
        %vm676 = vcmp.gt.f32.partialorder %v531, 0.0
        %vm677 = vcmp.gt.f32.partialorder %v533, 0.0
        %vm678 = vcmp.gt.f32.partialorder %v535, 0.0
        %vm679 = vcmp.gt.f32.partialorder %v539, 0.0
        %vm680 = vcmp.gt.f32.partialorder %v541, 0.0
        %vm681 = vcmp.gt.f32.partialorder %v543, 0.0
        %vm682 = vcmp.gt.f32.partialorder %v545, 0.0
        %vm683 = vcmp.gt.f32.partialorder %v549, 0.0
        %vm684 = vcmp.gt.f32.partialorder %v551, 0.0
        %vm685 = vcmp.gt.f32.partialorder %v553, 0.0
        %vm686 = vcmp.gt.f32.partialorder %v555, 0.0
        %vm687 = vcmp.gt.f32.partialorder %v559, 0.0
        %vm688 = vcmp.gt.f32.partialorder %v561, 0.0
        %vm689 = vcmp.gt.f32.partialorder %v563, 0.0
        %vm690 = vcmp.gt.f32.partialorder %v565, 0.0
        %vm691 = vcmp.gt.f32.partialorder %v569, 0.0
        %vm692 = vcmp.gt.f32.partialorder %v571, 0.0
        %vm693 = vcmp.gt.f32.partialorder %v573, 0.0
        %vm694 = vcmp.gt.f32.partialorder %v575, 0.0
        %vm695 = vcmp.gt.f32.partialorder %v579, 0.0
        %vm696 = vcmp.gt.f32.partialorder %v581, 0.0
        %vm697 = vcmp.gt.f32.partialorder %v583, 0.0
        %vm698 = vcmp.gt.f32.partialorder %v585, 0.0
        %vm699 = vcmp.gt.f32.partialorder %v589, 0.0
        %vm700 = vcmp.gt.f32.partialorder %v591, 0.0
        %vm701 = vcmp.gt.f32.partialorder %v593, 0.0
        %vm702 = vcmp.gt.f32.partialorder %v595, 0.0
        %vm703 = vcmp.gt.f32.partialorder %v599, 0.0
        %vm704 = vcmp.gt.f32.partialorder %v601, 0.0
        %vm705 = vcmp.gt.f32.partialorder %v603, 0.0
        %vm706 = vcmp.gt.f32.partialorder %v605, 0.0
        %vm707 = vcmp.gt.f32.partialorder %v609, 0.0
        %vm708 = vcmp.gt.f32.partialorder %v611, 0.0
        %vm709 = vcmp.gt.f32.partialorder %v613, 0.0
        %vm710 = vcmp.gt.f32.partialorder %v615, 0.0
        %vm711 = vcmp.gt.f32.partialorder %v619, 0.0
        %vm712 = vcmp.gt.f32.partialorder %v621, 0.0
        %vm713 = vcmp.gt.f32.partialorder %v623, 0.0
        %vm714 = vcmp.gt.f32.partialorder %v625, 0.0
        %vm715 = vcmp.gt.f32.partialorder %v629, 0.0
        %vm716 = vcmp.gt.f32.partialorder %v631, 0.0
        %vm717 = vcmp.gt.f32.partialorder %v633, 0.0
        %vm718 = vcmp.gt.f32.partialorder %v635, 0.0
        %vm719 = vcmp.gt.f32.partialorder %v639, 0.0
        %vm720 = vcmp.gt.f32.partialorder %v641, 0.0
        %vm721 = vcmp.gt.f32.partialorder %v643, 0.0
        %vm722 = vcmp.gt.f32.partialorder %v645, 0.0
        %vm723 = vcmp.gt.f32.partialorder %v649, 0.0
        %vm724 = vcmp.gt.f32.partialorder %v651, 0.0
        %vm725 = vcmp.gt.f32.partialorder %v653, 0.0
        %vm726 = vcmp.gt.f32.partialorder %v655, 0.0
        %vm727 = vcmp.gt.f32.partialorder %v659, 0.0
        %vm728 = vcmp.gt.f32.partialorder %v661, 0.0
        %vm729 = vcmp.gt.f32.partialorder %v663, 0.0
        %vm730 = vcmp.gt.f32.partialorder %v665, 0.0
        %v731 = vmul.f32 %v509, 0.01
        %v732 = vmul.f32 %v511, 0.01
        %v733 = vmul.f32 %v513, 0.01
        %v734 = vmul.f32 %v515, 0.01
        %v735 = vmul.f32 %v519, 0.01
        %v736 = vmul.f32 %v521, 0.01
        %v737 = vmul.f32 %v523, 0.01
        %v738 = vmul.f32 %v525, 0.01
        %v739 = vmul.f32 %v529, 0.01
        %v740 = vmul.f32 %v531, 0.01
        %v741 = vmul.f32 %v533, 0.01
        %v742 = vmul.f32 %v535, 0.01
        %v743 = vmul.f32 %v539, 0.01
        %v744 = vmul.f32 %v541, 0.01
        %v745 = vmul.f32 %v543, 0.01
        %v746 = vmul.f32 %v545, 0.01
        %v747 = vmul.f32 %v549, 0.01
        %v748 = vmul.f32 %v551, 0.01
        %v749 = vmul.f32 %v553, 0.01
        %v750 = vmul.f32 %v555, 0.01
        %v751 = vmul.f32 %v559, 0.01
        %v752 = vmul.f32 %v561, 0.01
        %v753 = vmul.f32 %v563, 0.01
        %v754 = vmul.f32 %v565, 0.01
        %v755 = vmul.f32 %v569, 0.01
        %v756 = vmul.f32 %v571, 0.01
        %v757 = vmul.f32 %v573, 0.01
        %v758 = vmul.f32 %v575, 0.01
        %v759 = vmul.f32 %v579, 0.01
        %v760 = vmul.f32 %v581, 0.01
        %v761 = vmul.f32 %v583, 0.01
        %v762 = vmul.f32 %v585, 0.01
        %v763 = vmul.f32 %v589, 0.01
        %v764 = vmul.f32 %v591, 0.01
        %v765 = vmul.f32 %v593, 0.01
        %v766 = vmul.f32 %v595, 0.01
        %v767 = vmul.f32 %v599, 0.01
        %v768 = vmul.f32 %v601, 0.01
        %v769 = vmul.f32 %v603, 0.01
        %v770 = vmul.f32 %v605, 0.01
        %v771 = vmul.f32 %v609, 0.01
        %v772 = vmul.f32 %v611, 0.01
        %v773 = vmul.f32 %v613, 0.01
        %v774 = vmul.f32 %v615, 0.01
        %v775 = vmul.f32 %v619, 0.01
        %v776 = vmul.f32 %v621, 0.01
        %v777 = vmul.f32 %v623, 0.01
        %v778 = vmul.f32 %v625, 0.01
        %v779 = vmul.f32 %v629, 0.01
        %v780 = vmul.f32 %v631, 0.01
        %v781 = vmul.f32 %v633, 0.01
        %v782 = vmul.f32 %v635, 0.01
        %v783 = vmul.f32 %v639, 0.01
        %v784 = vmul.f32 %v641, 0.01
        %v785 = vmul.f32 %v643, 0.01
        %v786 = vmul.f32 %v645, 0.01
        %v787 = vmul.f32 %v649, 0.01
        %v788 = vmul.f32 %v651, 0.01
        %v789 = vmul.f32 %v653, 0.01
        %v790 = vmul.f32 %v655, 0.01
        %v791 = vmul.f32 %v659, 0.01
        %v792 = vmul.f32 %v661, 0.01
        %v793 = vmul.f32 %v663, 0.01
        %v794 = vmul.f32 %v665, 0.01
        %v795 = vsel %vm667, %v509, %v731
        %v796 = vsel %vm668, %v511, %v732
        %v797 = vsel %vm669, %v513, %v733
        %v798 = vsel %vm670, %v515, %v734
        %v799 = vsel %vm671, %v519, %v735
        %v800 = vsel %vm672, %v521, %v736
        %v801 = vsel %vm673, %v523, %v737
        %v802 = vsel %vm674, %v525, %v738
        %v803 = vsel %vm675, %v529, %v739
        %v804 = vsel %vm676, %v531, %v740
        %v805 = vsel %vm677, %v533, %v741
        %v806 = vsel %vm678, %v535, %v742
        %v807 = vsel %vm679, %v539, %v743
        %v808 = vsel %vm680, %v541, %v744
        %v809 = vsel %vm681, %v543, %v745
        %v810 = vsel %vm682, %v545, %v746
        %v811 = vsel %vm683, %v549, %v747
        %v812 = vsel %vm684, %v551, %v748
        %v813 = vsel %vm685, %v553, %v749
        %v814 = vsel %vm686, %v555, %v750
        %v815 = vsel %vm687, %v559, %v751
        %v816 = vsel %vm688, %v561, %v752
        %v817 = vsel %vm689, %v563, %v753
        %v818 = vsel %vm690, %v565, %v754
        %v819 = vsel %vm691, %v569, %v755
        %v820 = vsel %vm692, %v571, %v756
        %v821 = vsel %vm693, %v573, %v757
        %v822 = vsel %vm694, %v575, %v758
        %v823 = vsel %vm695, %v579, %v759
        %v824 = vsel %vm696, %v581, %v760
        %v825 = vsel %vm697, %v583, %v761
        %v826 = vsel %vm698, %v585, %v762
        %v827 = vsel %vm699, %v589, %v763
        %v828 = vsel %vm700, %v591, %v764
        %v829 = vsel %vm701, %v593, %v765
        %v830 = vsel %vm702, %v595, %v766
        %v831 = vsel %vm703, %v599, %v767
        %v832 = vsel %vm704, %v601, %v768
        %v833 = vsel %vm705, %v603, %v769
        %v834 = vsel %vm706, %v605, %v770
        %v835 = vsel %vm707, %v609, %v771
        %v836 = vsel %vm708, %v611, %v772
        %v837 = vsel %vm709, %v613, %v773
        %v838 = vsel %vm710, %v615, %v774
        %v839 = vsel %vm711, %v619, %v775
        %v840 = vsel %vm712, %v621, %v776
        %v841 = vsel %vm713, %v623, %v777
        %v842 = vsel %vm714, %v625, %v778
        %v843 = vsel %vm715, %v629, %v779
        %v844 = vsel %vm716, %v631, %v780
        %v845 = vsel %vm717, %v633, %v781
        %v846 = vsel %vm718, %v635, %v782
        %v847 = vsel %vm719, %v639, %v783
        %v848 = vsel %vm720, %v641, %v784
        %v849 = vsel %vm721, %v643, %v785
        %v850 = vsel %vm722, %v645, %v786
        %v851 = vsel %vm723, %v649, %v787
        %v852 = vsel %vm724, %v651, %v788
        %v853 = vsel %vm725, %v653, %v789
        %v854 = vsel %vm726, %v655, %v790
        %v855 = vsel %vm727, %v659, %v791
        %v856 = vsel %vm728, %v661, %v792
        %v857 = vsel %vm729, %v663, %v793
        %v858 = vsel %vm730, %v665, %v794
        %v859 = vpack.c.bf16 %v797, %v795
        %v860 = vpack.c.bf16 %v798, %v796
        %v861 = vpack.c.bf16 %v801, %v799
        %v862 = vpack.c.bf16 %v802, %v800
        %v863 = vpack.c.bf16 %v805, %v803
        %v864 = vpack.c.bf16 %v806, %v804
        %v865 = vpack.c.bf16 %v809, %v807
        %v866 = vpack.c.bf16 %v810, %v808
        %v867 = vpack.c.bf16 %v813, %v811
        %v868 = vpack.c.bf16 %v814, %v812
        %v869 = vpack.c.bf16 %v817, %v815
        %v870 = vpack.c.bf16 %v818, %v816
        %v871 = vpack.c.bf16 %v821, %v819
        %v872 = vpack.c.bf16 %v822, %v820
        %v873 = vpack.c.bf16 %v825, %v823
        %v874 = vpack.c.bf16 %v826, %v824
        %v875 = vpack.c.bf16 %v829, %v827
        %v876 = vpack.c.bf16 %v830, %v828
        %v877 = vpack.c.bf16 %v833, %v831
        %v878 = vpack.c.bf16 %v834, %v832
        %v879 = vpack.c.bf16 %v837, %v835
        %v880 = vpack.c.bf16 %v838, %v836
        %v881 = vpack.c.bf16 %v841, %v839
        %v882 = vpack.c.bf16 %v842, %v840
        %v883 = vpack.c.bf16 %v845, %v843
        %v884 = vpack.c.bf16 %v846, %v844
        %v885 = vpack.c.bf16 %v849, %v847
        %v886 = vpack.c.bf16 %v850, %v848
        %v887 = vpack.c.bf16 %v853, %v851
        %v888 = vpack.c.bf16 %v854, %v852
        %v889 = vpack.c.bf16 %v857, %v855
        %v890 = vpack.c.bf16 %v858, %v856
        %v891 = vld [vmem:[#allocation5] sm:$0xff]
        %v892 = vld [vmem:[#allocation5 + $0x8] sm:$0xff]
        %v893 = vld [vmem:[#allocation5 + $0x10] sm:$0xff]
        %v894 = vld [vmem:[#allocation5 + $0x18] sm:$0xff]
        %v895 = vld [vmem:[#allocation5 + $0x20] sm:$0xff]
        %v896 = vld [vmem:[#allocation5 + $0x28] sm:$0xff]
        %v897 = vld [vmem:[#allocation5 + $0x30] sm:$0xff]
        %v898 = vld [vmem:[#allocation5 + $0x38] sm:$0xff]
        %v899 = vld [vmem:[#allocation5 + $0x40] sm:$0xff]
        %v900 = vld [vmem:[#allocation5 + $0x48] sm:$0xff]
        %v901 = vld [vmem:[#allocation5 + $0x50] sm:$0xff]
        %v902 = vld [vmem:[#allocation5 + $0x58] sm:$0xff]
        %v903 = vld [vmem:[#allocation5 + $0x60] sm:$0xff]
        %v904 = vld [vmem:[#allocation5 + $0x68] sm:$0xff]
        %v905 = vld [vmem:[#allocation5 + $0x70] sm:$0xff]
        %v906 = vld [vmem:[#allocation5 + $0x78] sm:$0xff]
        %v907 = vld [vmem:[#allocation5 + $0x80] sm:$0xff]
        %v908 = vld [vmem:[#allocation5 + $0x88] sm:$0xff]
        %v909 = vld [vmem:[#allocation5 + $0x90] sm:$0xff]
        %v910 = vld [vmem:[#allocation5 + $0x98] sm:$0xff]
        %v911 = vld [vmem:[#allocation5 + $0xa0] sm:$0xff]
        %v912 = vld [vmem:[#allocation5 + $0xa8] sm:$0xff]
        %v913 = vld [vmem:[#allocation5 + $0xb0] sm:$0xff]
        %v914 = vld [vmem:[#allocation5 + $0xb8] sm:$0xff]
        %v915 = vld [vmem:[#allocation5 + $0xc0] sm:$0xff]
        %v916 = vld [vmem:[#allocation5 + $0xc8] sm:$0xff]
        %v917 = vld [vmem:[#allocation5 + $0xd0] sm:$0xff]
        %v918 = vld [vmem:[#allocation5 + $0xd8] sm:$0xff]
        %v919 = vld [vmem:[#allocation5 + $0xe0] sm:$0xff]
        %v920 = vld [vmem:[#allocation5 + $0xe8] sm:$0xff]
        %v921 = vld [vmem:[#allocation5 + $0xf0] sm:$0xff]
        %v922 = vld [vmem:[#allocation5 + $0xf8] sm:$0xff]
        %v923 = vld [vmem:[%s4] sm:$0x3]
        %v925 = vlaneseq
        %v926 = vshrl.u32 %v925, 7
        %v927 = vsub.s32 0, %v926
        %v928 = vrot.slane %v923, %v927
        %v929 = vlaneseq
        %v930 = vshrl.u32 %v929, 7
        %v931 = vsub.s32 1, %v930
        %v932 = vrot.slane %v923, %v931
        %v967 = vunpack.c.l.b16 %v891
        %v968 = vunpack.c.h.b16 %v891
        %v969 = vunpack.c.l.b16 %v892
        %v970 = vunpack.c.h.b16 %v892
        %v971 = vunpack.c.l.b16 %v893
        %v972 = vunpack.c.h.b16 %v893
        %v973 = vunpack.c.l.b16 %v894
        %v974 = vunpack.c.h.b16 %v894
        %v975 = vunpack.c.l.b16 %v895
        %v976 = vunpack.c.h.b16 %v895
        %v977 = vunpack.c.l.b16 %v896
        %v978 = vunpack.c.h.b16 %v896
        %v979 = vunpack.c.l.b16 %v897
        %v980 = vunpack.c.h.b16 %v897
        %v981 = vunpack.c.l.b16 %v898
        %v982 = vunpack.c.h.b16 %v898
        %v983 = vunpack.c.l.b16 %v899
        %v984 = vunpack.c.h.b16 %v899
        %v985 = vunpack.c.l.b16 %v900
        %v986 = vunpack.c.h.b16 %v900
        %v987 = vunpack.c.l.b16 %v901
        %v988 = vunpack.c.h.b16 %v901
        %v989 = vunpack.c.l.b16 %v902
        %v990 = vunpack.c.h.b16 %v902
        %v991 = vunpack.c.l.b16 %v903
        %v992 = vunpack.c.h.b16 %v903
        %v993 = vunpack.c.l.b16 %v904
        %v994 = vunpack.c.h.b16 %v904
        %v995 = vunpack.c.l.b16 %v905
        %v996 = vunpack.c.h.b16 %v905
        %v997 = vunpack.c.l.b16 %v906
        %v998 = vunpack.c.h.b16 %v906
        %v999 = vunpack.c.l.b16 %v907
        %v1000 = vunpack.c.h.b16 %v907
        %v1001 = vunpack.c.l.b16 %v908
        %v1002 = vunpack.c.h.b16 %v908
        %v1003 = vunpack.c.l.b16 %v909
        %v1004 = vunpack.c.h.b16 %v909
        %v1005 = vunpack.c.l.b16 %v910
        %v1006 = vunpack.c.h.b16 %v910
        %v1007 = vunpack.c.l.b16 %v911
        %v1008 = vunpack.c.h.b16 %v911
        %v1009 = vunpack.c.l.b16 %v912
        %v1010 = vunpack.c.h.b16 %v912
        %v1011 = vunpack.c.l.b16 %v913
        %v1012 = vunpack.c.h.b16 %v913
        %v1013 = vunpack.c.l.b16 %v914
        %v1014 = vunpack.c.h.b16 %v914
        %v1015 = vunpack.c.l.b16 %v915
        %v1016 = vunpack.c.h.b16 %v915
        %v1017 = vunpack.c.l.b16 %v916
        %v1018 = vunpack.c.h.b16 %v916
        %v1019 = vunpack.c.l.b16 %v917
        %v1020 = vunpack.c.h.b16 %v917
        %v1021 = vunpack.c.l.b16 %v918
        %v1022 = vunpack.c.h.b16 %v918
        %v1023 = vunpack.c.l.b16 %v919
        %v1024 = vunpack.c.h.b16 %v919
        %v1025 = vunpack.c.l.b16 %v920
        %v1026 = vunpack.c.h.b16 %v920
        %v1027 = vunpack.c.l.b16 %v921
        %v1028 = vunpack.c.h.b16 %v921
        %v1029 = vunpack.c.l.b16 %v922
        %v1030 = vunpack.c.h.b16 %v922
        %v1031 = vpack.c.b16 %v969, %v967
        %v1032 = vpack.c.b16 %v970, %v968
        %v1033 = vpack.c.b16 %v973, %v971
        %v1034 = vpack.c.b16 %v974, %v972
        %v1035 = vpack.c.b16 %v977, %v975
        %v1036 = vpack.c.b16 %v978, %v976
        %v1037 = vpack.c.b16 %v981, %v979
        %v1038 = vpack.c.b16 %v982, %v980
        %v1039 = vpack.c.b16 %v985, %v983
        %v1040 = vpack.c.b16 %v986, %v984
        %v1041 = vpack.c.b16 %v989, %v987
        %v1042 = vpack.c.b16 %v990, %v988
        %v1043 = vpack.c.b16 %v993, %v991
        %v1044 = vpack.c.b16 %v994, %v992
        %v1045 = vpack.c.b16 %v997, %v995
        %v1046 = vpack.c.b16 %v998, %v996
        %v1047 = vpack.c.b16 %v1001, %v999
        %v1048 = vpack.c.b16 %v1002, %v1000
        %v1049 = vpack.c.b16 %v1005, %v1003
        %v1050 = vpack.c.b16 %v1006, %v1004
        %v1051 = vpack.c.b16 %v1009, %v1007
        %v1052 = vpack.c.b16 %v1010, %v1008
        %v1053 = vpack.c.b16 %v1013, %v1011
        %v1054 = vpack.c.b16 %v1014, %v1012
        %v1055 = vpack.c.b16 %v1017, %v1015
        %v1056 = vpack.c.b16 %v1018, %v1016
        %v1057 = vpack.c.b16 %v1021, %v1019
        %v1058 = vpack.c.b16 %v1022, %v1020
        %v1059 = vpack.c.b16 %v1025, %v1023
        %v1060 = vpack.c.b16 %v1026, %v1024
        %v1061 = vpack.c.b16 %v1029, %v1027
        %v1062 = vpack.c.b16 %v1030, %v1028
        %1095 = vmatprep.subr.bf16.mxu0 %v1032
        %1096 = vmatpush1.bf16.msra.mxu0 %v1031
        %1097 = vmatprep.subr.bf16.mxu0 %v1034
        %1098 = vmatpush1.bf16.msra.mxu0 %v1033
        %1099 = vmatprep.subr.bf16.mxu0 %v1036
        %1100 = vmatpush1.bf16.msra.mxu0 %v1035
        %1101 = vmatprep.subr.bf16.mxu0 %v1038
        %1102 = vmatpush1.bf16.msra.mxu0 %v1037
        %1103 = vmatprep.subr.bf16.mxu0 %v1040
        %1104 = vmatpush1.bf16.msra.mxu0 %v1039
        %1105 = vmatprep.subr.bf16.mxu0 %v1042
        %1106 = vmatpush1.bf16.msra.mxu0 %v1041
        %1107 = vmatprep.subr.bf16.mxu0 %v1044
        %1108 = vmatpush1.bf16.msra.mxu0 %v1043
        %1109 = vmatprep.subr.bf16.mxu0 %v1046
        %1110 = vmatpush1.bf16.msra.mxu0 %v1045
        %1111 = vmatprep.subr.bf16.mxu0 %v1048
        %1112 = vmatpush1.bf16.msra.mxu0 %v1047
        %1113 = vmatprep.subr.bf16.mxu0 %v1050
        %1114 = vmatpush1.bf16.msra.mxu0 %v1049
        %1115 = vmatprep.subr.bf16.mxu0 %v1052
        %1116 = vmatpush1.bf16.msra.mxu0 %v1051
        %1117 = vmatprep.subr.bf16.mxu0 %v1054
        %1118 = vmatpush1.bf16.msra.mxu0 %v1053
        %1119 = vmatprep.subr.bf16.mxu0 %v1056
        %1120 = vmatpush1.bf16.msra.mxu0 %v1055
        %1121 = vmatprep.subr.bf16.mxu0 %v1058
        %1122 = vmatpush1.bf16.msra.mxu0 %v1057
        %1123 = vmatprep.subr.bf16.mxu0 %v1060
        %1124 = vmatpush1.bf16.msra.mxu0 %v1059
        %1125 = vmatprep.subr.bf16.mxu0 %v1062
        %1126 = vmatpush1.bf16.msra.mxu0 %v1061
        %1127 = vmatprep.mubr.bf16.mxu0 %v860
        %1128 = vmatmul.mubr.bf16.gmra.mrb[0].mxu0 %v859
        %v1129 = vpop.f32.mrb[0].mxu0
        %v1130 = vadd.f32 %v928, %v1129
        %v1131 = vpop.f32.mrb[0].mxu0
        %v1132 = vadd.f32 %v932, %v1131
        %v1133 = vpop.f32.mrb[0].mxu0
        %v1134 = vadd.f32 %v928, %v1133
        %v1135 = vpop.f32.mrb[0].mxu0
        %v1136 = vadd.f32 %v932, %v1135
        %1137 = vmatprep.mubr.bf16.mxu0 %v862
        %1138 = vmatmul.mubr.bf16.gmra.mrb[0].mxu0 %v861
        %v1139 = vpop.f32.mrb[0].mxu0
        %v1140 = vadd.f32 %v928, %v1139
        %v1141 = vpop.f32.mrb[0].mxu0
        %v1142 = vadd.f32 %v932, %v1141
        %v1143 = vpop.f32.mrb[0].mxu0
        %v1144 = vadd.f32 %v928, %v1143
        %v1145 = vpop.f32.mrb[0].mxu0
        %v1146 = vadd.f32 %v932, %v1145
        %1147 = vmatprep.mubr.bf16.mxu0 %v864
        %1148 = vmatmul.mubr.bf16.gmra.mrb[0].mxu0 %v863
        %v1149 = vpop.f32.mrb[0].mxu0
        %v1150 = vadd.f32 %v928, %v1149
        %v1151 = vpop.f32.mrb[0].mxu0
        %v1152 = vadd.f32 %v932, %v1151
        %v1153 = vpop.f32.mrb[0].mxu0
        %v1154 = vadd.f32 %v928, %v1153
        %v1155 = vpop.f32.mrb[0].mxu0
        %v1156 = vadd.f32 %v932, %v1155
        %1157 = vmatprep.mubr.bf16.mxu0 %v866
        %1158 = vmatmul.mubr.bf16.gmra.mrb[0].mxu0 %v865
        %v1159 = vpop.f32.mrb[0].mxu0
        %v1160 = vadd.f32 %v928, %v1159
        %v1161 = vpop.f32.mrb[0].mxu0
        %v1162 = vadd.f32 %v932, %v1161
        %v1163 = vpop.f32.mrb[0].mxu0
        %v1164 = vadd.f32 %v928, %v1163
        %v1165 = vpop.f32.mrb[0].mxu0
        %v1166 = vadd.f32 %v932, %v1165
        %1167 = vmatprep.mubr.bf16.mxu0 %v868
        %1168 = vmatmul.mubr.bf16.gmra.mrb[0].mxu0 %v867
        %v1169 = vpop.f32.mrb[0].mxu0
        %v1170 = vadd.f32 %v928, %v1169
        %v1171 = vpop.f32.mrb[0].mxu0
        %v1172 = vadd.f32 %v932, %v1171
        %v1173 = vpop.f32.mrb[0].mxu0
        %v1174 = vadd.f32 %v928, %v1173
        %v1175 = vpop.f32.mrb[0].mxu0
        %v1176 = vadd.f32 %v932, %v1175
        %1177 = vmatprep.mubr.bf16.mxu0 %v870
        %1178 = vmatmul.mubr.bf16.gmra.mrb[0].mxu0 %v869
        %v1179 = vpop.f32.mrb[0].mxu0
        %v1180 = vadd.f32 %v928, %v1179
        %v1181 = vpop.f32.mrb[0].mxu0
        %v1182 = vadd.f32 %v932, %v1181
        %v1183 = vpop.f32.mrb[0].mxu0
        %v1184 = vadd.f32 %v928, %v1183
        %v1185 = vpop.f32.mrb[0].mxu0
        %v1186 = vadd.f32 %v932, %v1185
        %1187 = vmatprep.mubr.bf16.mxu0 %v872
        %1188 = vmatmul.mubr.bf16.gmra.mrb[0].mxu0 %v871
        %v1189 = vpop.f32.mrb[0].mxu0
        %v1190 = vadd.f32 %v928, %v1189
        %v1191 = vpop.f32.mrb[0].mxu0
        %v1192 = vadd.f32 %v932, %v1191
        %v1193 = vpop.f32.mrb[0].mxu0
        %v1194 = vadd.f32 %v928, %v1193
        %v1195 = vpop.f32.mrb[0].mxu0
        %v1196 = vadd.f32 %v932, %v1195
        %1197 = vmatprep.mubr.bf16.mxu0 %v874
        %1198 = vmatmul.mubr.bf16.gmra.mrb[0].mxu0 %v873
        %v1199 = vpop.f32.mrb[0].mxu0
        %v1200 = vadd.f32 %v928, %v1199
        %v1201 = vpop.f32.mrb[0].mxu0
        %v1202 = vadd.f32 %v932, %v1201
        %v1203 = vpop.f32.mrb[0].mxu0
        %v1204 = vadd.f32 %v928, %v1203
        %v1205 = vpop.f32.mrb[0].mxu0
        %v1206 = vadd.f32 %v932, %v1205
        %1207 = vmatprep.mubr.bf16.mxu0 %v876
        %1208 = vmatmul.mubr.bf16.gmra.mrb[0].mxu0 %v875
        %v1209 = vpop.f32.mrb[0].mxu0
        %v1210 = vadd.f32 %v928, %v1209
        %v1211 = vpop.f32.mrb[0].mxu0
        %v1212 = vadd.f32 %v932, %v1211
        %v1213 = vpop.f32.mrb[0].mxu0
        %v1214 = vadd.f32 %v928, %v1213
        %v1215 = vpop.f32.mrb[0].mxu0
        %v1216 = vadd.f32 %v932, %v1215
        %1217 = vmatprep.mubr.bf16.mxu0 %v878
        %1218 = vmatmul.mubr.bf16.gmra.mrb[0].mxu0 %v877
        %v1219 = vpop.f32.mrb[0].mxu0
        %v1220 = vadd.f32 %v928, %v1219
        %v1221 = vpop.f32.mrb[0].mxu0
        %v1222 = vadd.f32 %v932, %v1221
        %v1223 = vpop.f32.mrb[0].mxu0
        %v1224 = vadd.f32 %v928, %v1223
        %v1225 = vpop.f32.mrb[0].mxu0
        %v1226 = vadd.f32 %v932, %v1225
        %1227 = vmatprep.mubr.bf16.mxu0 %v880
        %1228 = vmatmul.mubr.bf16.gmra.mrb[0].mxu0 %v879
        %v1229 = vpop.f32.mrb[0].mxu0
        %v1230 = vadd.f32 %v928, %v1229
        %v1231 = vpop.f32.mrb[0].mxu0
        %v1232 = vadd.f32 %v932, %v1231
        %v1233 = vpop.f32.mrb[0].mxu0
        %v1234 = vadd.f32 %v928, %v1233
        %v1235 = vpop.f32.mrb[0].mxu0
        %v1236 = vadd.f32 %v932, %v1235
        %1237 = vmatprep.mubr.bf16.mxu0 %v882
        %1238 = vmatmul.mubr.bf16.gmra.mrb[0].mxu0 %v881
        %v1239 = vpop.f32.mrb[0].mxu0
        %v1240 = vadd.f32 %v928, %v1239
        %v1241 = vpop.f32.mrb[0].mxu0
        %v1242 = vadd.f32 %v932, %v1241
        %v1243 = vpop.f32.mrb[0].mxu0
        %v1244 = vadd.f32 %v928, %v1243
        %v1245 = vpop.f32.mrb[0].mxu0
        %v1246 = vadd.f32 %v932, %v1245
        %1247 = vmatprep.mubr.bf16.mxu0 %v884
        %1248 = vmatmul.mubr.bf16.gmra.mrb[0].mxu0 %v883
        %v1249 = vpop.f32.mrb[0].mxu0
        %v1250 = vadd.f32 %v928, %v1249
        %v1251 = vpop.f32.mrb[0].mxu0
        %v1252 = vadd.f32 %v932, %v1251
        %v1253 = vpop.f32.mrb[0].mxu0
        %v1254 = vadd.f32 %v928, %v1253
        %v1255 = vpop.f32.mrb[0].mxu0
        %v1256 = vadd.f32 %v932, %v1255
        %1257 = vmatprep.mubr.bf16.mxu0 %v886
        %1258 = vmatmul.mubr.bf16.gmra.mrb[0].mxu0 %v885
        %v1259 = vpop.f32.mrb[0].mxu0
        %v1260 = vadd.f32 %v928, %v1259
        %v1261 = vpop.f32.mrb[0].mxu0
        %v1262 = vadd.f32 %v932, %v1261
        %v1263 = vpop.f32.mrb[0].mxu0
        %v1264 = vadd.f32 %v928, %v1263
        %v1265 = vpop.f32.mrb[0].mxu0
        %v1266 = vadd.f32 %v932, %v1265
        %1267 = vmatprep.mubr.bf16.mxu0 %v888
        %1268 = vmatmul.mubr.bf16.gmra.mrb[0].mxu0 %v887
        %v1269 = vpop.f32.mrb[0].mxu0
        %v1270 = vadd.f32 %v928, %v1269
        %v1271 = vpop.f32.mrb[0].mxu0
        %v1272 = vadd.f32 %v932, %v1271
        %v1273 = vpop.f32.mrb[0].mxu0
        %v1274 = vadd.f32 %v928, %v1273
        %v1275 = vpop.f32.mrb[0].mxu0
        %v1276 = vadd.f32 %v932, %v1275
        %1277 = vmatprep.mubr.bf16.mxu0 %v890
        %1278 = vmatmul.mubr.bf16.gmra.mrb[0].mxu0 %v889
        %v1279 = vpop.f32.mrb[0].mxu0
        %v1280 = vadd.f32 %v928, %v1279
        %v1281 = vpop.f32.mrb[0].mxu0
        %v1282 = vadd.f32 %v932, %v1281
        %v1283 = vpop.f32.mrb[0].mxu0
        %v1284 = vadd.f32 %v928, %v1283
        %v1285 = vpop.f32.mrb[0].mxu0
        %v1286 = vadd.f32 %v932, %v1285
        %1287 = vdwg.mxu0
        %vm1288 = vcmp.gt.f32.partialorder %v1130, 0.0
        %vm1289 = vcmp.gt.f32.partialorder %v1132, 0.0
        %vm1290 = vcmp.gt.f32.partialorder %v1134, 0.0
        %vm1291 = vcmp.gt.f32.partialorder %v1136, 0.0
        %vm1292 = vcmp.gt.f32.partialorder %v1140, 0.0
        %vm1293 = vcmp.gt.f32.partialorder %v1142, 0.0
        %vm1294 = vcmp.gt.f32.partialorder %v1144, 0.0
        %vm1295 = vcmp.gt.f32.partialorder %v1146, 0.0
        %vm1296 = vcmp.gt.f32.partialorder %v1150, 0.0
        %vm1297 = vcmp.gt.f32.partialorder %v1152, 0.0
        %vm1298 = vcmp.gt.f32.partialorder %v1154, 0.0
        %vm1299 = vcmp.gt.f32.partialorder %v1156, 0.0
        %vm1300 = vcmp.gt.f32.partialorder %v1160, 0.0
        %vm1301 = vcmp.gt.f32.partialorder %v1162, 0.0
        %vm1302 = vcmp.gt.f32.partialorder %v1164, 0.0
        %vm1303 = vcmp.gt.f32.partialorder %v1166, 0.0
        %vm1304 = vcmp.gt.f32.partialorder %v1170, 0.0
        %vm1305 = vcmp.gt.f32.partialorder %v1172, 0.0
        %vm1306 = vcmp.gt.f32.partialorder %v1174, 0.0
        %vm1307 = vcmp.gt.f32.partialorder %v1176, 0.0
        %vm1308 = vcmp.gt.f32.partialorder %v1180, 0.0
        %vm1309 = vcmp.gt.f32.partialorder %v1182, 0.0
        %vm1310 = vcmp.gt.f32.partialorder %v1184, 0.0
        %vm1311 = vcmp.gt.f32.partialorder %v1186, 0.0
        %vm1312 = vcmp.gt.f32.partialorder %v1190, 0.0
        %vm1313 = vcmp.gt.f32.partialorder %v1192, 0.0
        %vm1314 = vcmp.gt.f32.partialorder %v1194, 0.0
        %vm1315 = vcmp.gt.f32.partialorder %v1196, 0.0
        %vm1316 = vcmp.gt.f32.partialorder %v1200, 0.0
        %vm1317 = vcmp.gt.f32.partialorder %v1202, 0.0
        %vm1318 = vcmp.gt.f32.partialorder %v1204, 0.0
        %vm1319 = vcmp.gt.f32.partialorder %v1206, 0.0
        %vm1320 = vcmp.gt.f32.partialorder %v1210, 0.0
        %vm1321 = vcmp.gt.f32.partialorder %v1212, 0.0
        %vm1322 = vcmp.gt.f32.partialorder %v1214, 0.0
        %vm1323 = vcmp.gt.f32.partialorder %v1216, 0.0
        %vm1324 = vcmp.gt.f32.partialorder %v1220, 0.0
        %vm1325 = vcmp.gt.f32.partialorder %v1222, 0.0
        %vm1326 = vcmp.gt.f32.partialorder %v1224, 0.0
        %vm1327 = vcmp.gt.f32.partialorder %v1226, 0.0
        %vm1328 = vcmp.gt.f32.partialorder %v1230, 0.0
        %vm1329 = vcmp.gt.f32.partialorder %v1232, 0.0
        %vm1330 = vcmp.gt.f32.partialorder %v1234, 0.0
        %vm1331 = vcmp.gt.f32.partialorder %v1236, 0.0
        %vm1332 = vcmp.gt.f32.partialorder %v1240, 0.0
        %vm1333 = vcmp.gt.f32.partialorder %v1242, 0.0
        %vm1334 = vcmp.gt.f32.partialorder %v1244, 0.0
        %vm1335 = vcmp.gt.f32.partialorder %v1246, 0.0
        %vm1336 = vcmp.gt.f32.partialorder %v1250, 0.0
        %vm1337 = vcmp.gt.f32.partialorder %v1252, 0.0
        %vm1338 = vcmp.gt.f32.partialorder %v1254, 0.0
        %vm1339 = vcmp.gt.f32.partialorder %v1256, 0.0
        %vm1340 = vcmp.gt.f32.partialorder %v1260, 0.0
        %vm1341 = vcmp.gt.f32.partialorder %v1262, 0.0
        %vm1342 = vcmp.gt.f32.partialorder %v1264, 0.0
        %vm1343 = vcmp.gt.f32.partialorder %v1266, 0.0
        %vm1344 = vcmp.gt.f32.partialorder %v1270, 0.0
        %vm1345 = vcmp.gt.f32.partialorder %v1272, 0.0
        %vm1346 = vcmp.gt.f32.partialorder %v1274, 0.0
        %vm1347 = vcmp.gt.f32.partialorder %v1276, 0.0
        %vm1348 = vcmp.gt.f32.partialorder %v1280, 0.0
        %vm1349 = vcmp.gt.f32.partialorder %v1282, 0.0
        %vm1350 = vcmp.gt.f32.partialorder %v1284, 0.0
        %vm1351 = vcmp.gt.f32.partialorder %v1286, 0.0
        %v1352 = vmul.f32 %v1130, 0.01
        %v1353 = vmul.f32 %v1132, 0.01
        %v1354 = vmul.f32 %v1134, 0.01
        %v1355 = vmul.f32 %v1136, 0.01
        %v1356 = vmul.f32 %v1140, 0.01
        %v1357 = vmul.f32 %v1142, 0.01
        %v1358 = vmul.f32 %v1144, 0.01
        %v1359 = vmul.f32 %v1146, 0.01
        %v1360 = vmul.f32 %v1150, 0.01
        %v1361 = vmul.f32 %v1152, 0.01
        %v1362 = vmul.f32 %v1154, 0.01
        %v1363 = vmul.f32 %v1156, 0.01
        %v1364 = vmul.f32 %v1160, 0.01
        %v1365 = vmul.f32 %v1162, 0.01
        %v1366 = vmul.f32 %v1164, 0.01
        %v1367 = vmul.f32 %v1166, 0.01
        %v1368 = vmul.f32 %v1170, 0.01
        %v1369 = vmul.f32 %v1172, 0.01
        %v1370 = vmul.f32 %v1174, 0.01
        %v1371 = vmul.f32 %v1176, 0.01
        %v1372 = vmul.f32 %v1180, 0.01
        %v1373 = vmul.f32 %v1182, 0.01
        %v1374 = vmul.f32 %v1184, 0.01
        %v1375 = vmul.f32 %v1186, 0.01
        %v1376 = vmul.f32 %v1190, 0.01
        %v1377 = vmul.f32 %v1192, 0.01
        %v1378 = vmul.f32 %v1194, 0.01
        %v1379 = vmul.f32 %v1196, 0.01
        %v1380 = vmul.f32 %v1200, 0.01
        %v1381 = vmul.f32 %v1202, 0.01
        %v1382 = vmul.f32 %v1204, 0.01
        %v1383 = vmul.f32 %v1206, 0.01
        %v1384 = vmul.f32 %v1210, 0.01
        %v1385 = vmul.f32 %v1212, 0.01
        %v1386 = vmul.f32 %v1214, 0.01
        %v1387 = vmul.f32 %v1216, 0.01
        %v1388 = vmul.f32 %v1220, 0.01
        %v1389 = vmul.f32 %v1222, 0.01
        %v1390 = vmul.f32 %v1224, 0.01
        %v1391 = vmul.f32 %v1226, 0.01
        %v1392 = vmul.f32 %v1230, 0.01
        %v1393 = vmul.f32 %v1232, 0.01
        %v1394 = vmul.f32 %v1234, 0.01
        %v1395 = vmul.f32 %v1236, 0.01
        %v1396 = vmul.f32 %v1240, 0.01
        %v1397 = vmul.f32 %v1242, 0.01
        %v1398 = vmul.f32 %v1244, 0.01
        %v1399 = vmul.f32 %v1246, 0.01
        %v1400 = vmul.f32 %v1250, 0.01
        %v1401 = vmul.f32 %v1252, 0.01
        %v1402 = vmul.f32 %v1254, 0.01
        %v1403 = vmul.f32 %v1256, 0.01
        %v1404 = vmul.f32 %v1260, 0.01
        %v1405 = vmul.f32 %v1262, 0.01
        %v1406 = vmul.f32 %v1264, 0.01
        %v1407 = vmul.f32 %v1266, 0.01
        %v1408 = vmul.f32 %v1270, 0.01
        %v1409 = vmul.f32 %v1272, 0.01
        %v1410 = vmul.f32 %v1274, 0.01
        %v1411 = vmul.f32 %v1276, 0.01
        %v1412 = vmul.f32 %v1280, 0.01
        %v1413 = vmul.f32 %v1282, 0.01
        %v1414 = vmul.f32 %v1284, 0.01
        %v1415 = vmul.f32 %v1286, 0.01
        %v1416 = vsel %vm1288, %v1130, %v1352
        %v1417 = vsel %vm1289, %v1132, %v1353
        %v1418 = vsel %vm1290, %v1134, %v1354
        %v1419 = vsel %vm1291, %v1136, %v1355
        %v1420 = vsel %vm1292, %v1140, %v1356
        %v1421 = vsel %vm1293, %v1142, %v1357
        %v1422 = vsel %vm1294, %v1144, %v1358
        %v1423 = vsel %vm1295, %v1146, %v1359
        %v1424 = vsel %vm1296, %v1150, %v1360
        %v1425 = vsel %vm1297, %v1152, %v1361
        %v1426 = vsel %vm1298, %v1154, %v1362
        %v1427 = vsel %vm1299, %v1156, %v1363
        %v1428 = vsel %vm1300, %v1160, %v1364
        %v1429 = vsel %vm1301, %v1162, %v1365
        %v1430 = vsel %vm1302, %v1164, %v1366
        %v1431 = vsel %vm1303, %v1166, %v1367
        %v1432 = vsel %vm1304, %v1170, %v1368
        %v1433 = vsel %vm1305, %v1172, %v1369
        %v1434 = vsel %vm1306, %v1174, %v1370
        %v1435 = vsel %vm1307, %v1176, %v1371
        %v1436 = vsel %vm1308, %v1180, %v1372
        %v1437 = vsel %vm1309, %v1182, %v1373
        %v1438 = vsel %vm1310, %v1184, %v1374
        %v1439 = vsel %vm1311, %v1186, %v1375
        %v1440 = vsel %vm1312, %v1190, %v1376
        %v1441 = vsel %vm1313, %v1192, %v1377
        %v1442 = vsel %vm1314, %v1194, %v1378
        %v1443 = vsel %vm1315, %v1196, %v1379
        %v1444 = vsel %vm1316, %v1200, %v1380
        %v1445 = vsel %vm1317, %v1202, %v1381
        %v1446 = vsel %vm1318, %v1204, %v1382
        %v1447 = vsel %vm1319, %v1206, %v1383
        %v1448 = vsel %vm1320, %v1210, %v1384
        %v1449 = vsel %vm1321, %v1212, %v1385
        %v1450 = vsel %vm1322, %v1214, %v1386
        %v1451 = vsel %vm1323, %v1216, %v1387
        %v1452 = vsel %vm1324, %v1220, %v1388
        %v1453 = vsel %vm1325, %v1222, %v1389
        %v1454 = vsel %vm1326, %v1224, %v1390
        %v1455 = vsel %vm1327, %v1226, %v1391
        %v1456 = vsel %vm1328, %v1230, %v1392
        %v1457 = vsel %vm1329, %v1232, %v1393
        %v1458 = vsel %vm1330, %v1234, %v1394
        %v1459 = vsel %vm1331, %v1236, %v1395
        %v1460 = vsel %vm1332, %v1240, %v1396
        %v1461 = vsel %vm1333, %v1242, %v1397
        %v1462 = vsel %vm1334, %v1244, %v1398
        %v1463 = vsel %vm1335, %v1246, %v1399
        %v1464 = vsel %vm1336, %v1250, %v1400
        %v1465 = vsel %vm1337, %v1252, %v1401
        %v1466 = vsel %vm1338, %v1254, %v1402
        %v1467 = vsel %vm1339, %v1256, %v1403
        %v1468 = vsel %vm1340, %v1260, %v1404
        %v1469 = vsel %vm1341, %v1262, %v1405
        %v1470 = vsel %vm1342, %v1264, %v1406
        %v1471 = vsel %vm1343, %v1266, %v1407
        %v1472 = vsel %vm1344, %v1270, %v1408
        %v1473 = vsel %vm1345, %v1272, %v1409
        %v1474 = vsel %vm1346, %v1274, %v1410
        %v1475 = vsel %vm1347, %v1276, %v1411
        %v1476 = vsel %vm1348, %v1280, %v1412
        %v1477 = vsel %vm1349, %v1282, %v1413
        %v1478 = vsel %vm1350, %v1284, %v1414
        %v1479 = vsel %vm1351, %v1286, %v1415
        %v1480 = vpack.c.bf16 %v1418, %v1416
        %v1481 = vpack.c.bf16 %v1419, %v1417
        %v1482 = vpack.c.bf16 %v1422, %v1420
        %v1483 = vpack.c.bf16 %v1423, %v1421
        %v1484 = vpack.c.bf16 %v1426, %v1424
        %v1485 = vpack.c.bf16 %v1427, %v1425
        %v1486 = vpack.c.bf16 %v1430, %v1428
        %v1487 = vpack.c.bf16 %v1431, %v1429
        %v1488 = vpack.c.bf16 %v1434, %v1432
        %v1489 = vpack.c.bf16 %v1435, %v1433
        %v1490 = vpack.c.bf16 %v1438, %v1436
        %v1491 = vpack.c.bf16 %v1439, %v1437
        %v1492 = vpack.c.bf16 %v1442, %v1440
        %v1493 = vpack.c.bf16 %v1443, %v1441
        %v1494 = vpack.c.bf16 %v1446, %v1444
        %v1495 = vpack.c.bf16 %v1447, %v1445
        %v1496 = vpack.c.bf16 %v1450, %v1448
        %v1497 = vpack.c.bf16 %v1451, %v1449
        %v1498 = vpack.c.bf16 %v1454, %v1452
        %v1499 = vpack.c.bf16 %v1455, %v1453
        %v1500 = vpack.c.bf16 %v1458, %v1456
        %v1501 = vpack.c.bf16 %v1459, %v1457
        %v1502 = vpack.c.bf16 %v1462, %v1460
        %v1503 = vpack.c.bf16 %v1463, %v1461
        %v1504 = vpack.c.bf16 %v1466, %v1464
        %v1505 = vpack.c.bf16 %v1467, %v1465
        %v1506 = vpack.c.bf16 %v1470, %v1468
        %v1507 = vpack.c.bf16 %v1471, %v1469
        %v1508 = vpack.c.bf16 %v1474, %v1472
        %v1509 = vpack.c.bf16 %v1475, %v1473
        %v1510 = vpack.c.bf16 %v1478, %v1476
        %v1511 = vpack.c.bf16 %v1479, %v1477
        %v1512 = vld [vmem:[%s5] sm:$0xf]
        %v1513 = vld [vmem:[%s5 + $0x4] sm:$0xf]
        %v1514 = vld [vmem:[%s5 + $0x8] sm:$0xf]
        %v1515 = vld [vmem:[%s5 + $0xc] sm:$0xf]
        %v1516 = vld [vmem:[%s5 + $0x10] sm:$0xf]
        %v1517 = vld [vmem:[%s5 + $0x14] sm:$0xf]
        %v1518 = vld [vmem:[%s5 + $0x18] sm:$0xf]
        %v1519 = vld [vmem:[%s5 + $0x1c] sm:$0xf]
        %v1520 = vld [vmem:[%s5 + $0x20] sm:$0xf]
        %v1521 = vld [vmem:[%s5 + $0x24] sm:$0xf]
        %v1522 = vld [vmem:[%s5 + $0x28] sm:$0xf]
        %v1523 = vld [vmem:[%s5 + $0x2c] sm:$0xf]
        %v1524 = vld [vmem:[%s5 + $0x30] sm:$0xf]
        %v1525 = vld [vmem:[%s5 + $0x34] sm:$0xf]
        %v1526 = vld [vmem:[%s5 + $0x38] sm:$0xf]
        %v1527 = vld [vmem:[%s5 + $0x3c] sm:$0xf]
        %v1528 = vld [vmem:[%s5 + $0x40] sm:$0xf]
        %v1529 = vld [vmem:[%s5 + $0x44] sm:$0xf]
        %v1530 = vld [vmem:[%s5 + $0x48] sm:$0xf]
        %v1531 = vld [vmem:[%s5 + $0x4c] sm:$0xf]
        %v1532 = vld [vmem:[%s5 + $0x50] sm:$0xf]
        %v1533 = vld [vmem:[%s5 + $0x54] sm:$0xf]
        %v1534 = vld [vmem:[%s5 + $0x58] sm:$0xf]
        %v1535 = vld [vmem:[%s5 + $0x5c] sm:$0xf]
        %v1536 = vld [vmem:[%s5 + $0x60] sm:$0xf]
        %v1537 = vld [vmem:[%s5 + $0x64] sm:$0xf]
        %v1538 = vld [vmem:[%s5 + $0x68] sm:$0xf]
        %v1539 = vld [vmem:[%s5 + $0x6c] sm:$0xf]
        %v1540 = vld [vmem:[%s5 + $0x70] sm:$0xf]
        %v1541 = vld [vmem:[%s5 + $0x74] sm:$0xf]
        %v1542 = vld [vmem:[%s5 + $0x78] sm:$0xf]
        %v1543 = vld [vmem:[%s5 + $0x7c] sm:$0xf]
        %s1544 = sld [smem:[#allocation2]]
        %v1545 = vstv %s1544
        %v1578 = vunpack.c.l.b16 %v1512
        %v1579 = vunpack.c.l.b16 %v1513
        %v1580 = vunpack.c.l.b16 %v1514
        %v1581 = vunpack.c.l.b16 %v1515
        %v1582 = vunpack.c.l.b16 %v1516
        %v1583 = vunpack.c.l.b16 %v1517
        %v1584 = vunpack.c.l.b16 %v1518
        %v1585 = vunpack.c.l.b16 %v1519
        %v1586 = vunpack.c.l.b16 %v1520
        %v1587 = vunpack.c.l.b16 %v1521
        %v1588 = vunpack.c.l.b16 %v1522
        %v1589 = vunpack.c.l.b16 %v1523
        %v1590 = vunpack.c.l.b16 %v1524
        %v1591 = vunpack.c.l.b16 %v1525
        %v1592 = vunpack.c.l.b16 %v1526
        %v1593 = vunpack.c.l.b16 %v1527
        %v1594 = vunpack.c.l.b16 %v1528
        %v1595 = vunpack.c.l.b16 %v1529
        %v1596 = vunpack.c.l.b16 %v1530
        %v1597 = vunpack.c.l.b16 %v1531
        %v1598 = vunpack.c.l.b16 %v1532
        %v1599 = vunpack.c.l.b16 %v1533
        %v1600 = vunpack.c.l.b16 %v1534
        %v1601 = vunpack.c.l.b16 %v1535
        %v1602 = vunpack.c.l.b16 %v1536
        %v1603 = vunpack.c.l.b16 %v1537
        %v1604 = vunpack.c.l.b16 %v1538
        %v1605 = vunpack.c.l.b16 %v1539
        %v1606 = vunpack.c.l.b16 %v1540
        %v1607 = vunpack.c.l.b16 %v1541
        %v1608 = vunpack.c.l.b16 %v1542
        %v1609 = vunpack.c.l.b16 %v1543
        %v1610 = vpack.c.b16 %v1579, %v1578
        %v1611 = vpack.c.b16 %v1581, %v1580
        %v1612 = vpack.c.b16 %v1583, %v1582
        %v1613 = vpack.c.b16 %v1585, %v1584
        %v1614 = vpack.c.b16 %v1587, %v1586
        %v1615 = vpack.c.b16 %v1589, %v1588
        %v1616 = vpack.c.b16 %v1591, %v1590
        %v1617 = vpack.c.b16 %v1593, %v1592
        %v1618 = vpack.c.b16 %v1595, %v1594
        %v1619 = vpack.c.b16 %v1597, %v1596
        %v1620 = vpack.c.b16 %v1599, %v1598
        %v1621 = vpack.c.b16 %v1601, %v1600
        %v1622 = vpack.c.b16 %v1603, %v1602
        %v1623 = vpack.c.b16 %v1605, %v1604
        %v1624 = vpack.c.b16 %v1607, %v1606
        %v1625 = vpack.c.b16 %v1609, %v1608
        %1642 = vmatprep.subr.bf16.mxu0 0
        %1643 = vmatpush1.bf16.msra.mxu0 %v1610
        %1644 = vmatprep.subr.bf16.mxu0 0
        %1645 = vmatpush1.bf16.msra.mxu0 %v1611
        %1646 = vmatprep.subr.bf16.mxu0 0
        %1647 = vmatpush1.bf16.msra.mxu0 %v1612
        %1648 = vmatprep.subr.bf16.mxu0 0
        %1649 = vmatpush1.bf16.msra.mxu0 %v1613
        %1650 = vmatprep.subr.bf16.mxu0 0
        %1651 = vmatpush1.bf16.msra.mxu0 %v1614
        %1652 = vmatprep.subr.bf16.mxu0 0
        %1653 = vmatpush1.bf16.msra.mxu0 %v1615
        %1654 = vmatprep.subr.bf16.mxu0 0
        %1655 = vmatpush1.bf16.msra.mxu0 %v1616
        %1656 = vmatprep.subr.bf16.mxu0 0
        %1657 = vmatpush1.bf16.msra.mxu0 %v1617
        %1658 = vmatprep.subr.bf16.mxu0 0
        %1659 = vmatpush1.bf16.msra.mxu0 %v1618
        %1660 = vmatprep.subr.bf16.mxu0 0
        %1661 = vmatpush1.bf16.msra.mxu0 %v1619
        %1662 = vmatprep.subr.bf16.mxu0 0
        %1663 = vmatpush1.bf16.msra.mxu0 %v1620
        %1664 = vmatprep.subr.bf16.mxu0 0
        %1665 = vmatpush1.bf16.msra.mxu0 %v1621
        %1666 = vmatprep.subr.bf16.mxu0 0
        %1667 = vmatpush1.bf16.msra.mxu0 %v1622
        %1668 = vmatprep.subr.bf16.mxu0 0
        %1669 = vmatpush1.bf16.msra.mxu0 %v1623
        %1670 = vmatprep.subr.bf16.mxu0 0
        %1671 = vmatpush1.bf16.msra.mxu0 %v1624
        %1672 = vmatprep.subr.bf16.mxu0 0
        %1673 = vmatpush1.bf16.msra.mxu0 %v1625
        %1674 = vmatprep.mubr.bf16.mxu0 %v1481
        %1675 = vmatmul.mubr.bf16.gmra.mrb[0].mxu0 %v1480
        %v1676 = vpop.f32.mrb[0].mxu0
        %v1677 = vadd.f32 %v1545, %v1676
        %v1678 = vpop.f32.mrb[0].mxu0
        %v1679 = vpop.f32.mrb[0].mxu0
        %v1680 = vadd.f32 %v1545, %v1679
        %v1681 = vpop.f32.mrb[0].mxu0
        %1682 = vmatprep.mubr.bf16.mxu0 %v1483
        %1683 = vmatmul.mubr.bf16.gmra.mrb[0].mxu0 %v1482
        %v1684 = vpop.f32.mrb[0].mxu0
        %v1685 = vadd.f32 %v1545, %v1684
        %v1686 = vpop.f32.mrb[0].mxu0
        %v1687 = vpop.f32.mrb[0].mxu0
        %v1688 = vadd.f32 %v1545, %v1687
        %v1689 = vpop.f32.mrb[0].mxu0
        %1690 = vmatprep.mubr.bf16.mxu0 %v1485
        %1691 = vmatmul.mubr.bf16.gmra.mrb[0].mxu0 %v1484
        %v1692 = vpop.f32.mrb[0].mxu0
        %v1693 = vadd.f32 %v1545, %v1692
        %v1694 = vpop.f32.mrb[0].mxu0
        %v1695 = vpop.f32.mrb[0].mxu0
        %v1696 = vadd.f32 %v1545, %v1695
        %v1697 = vpop.f32.mrb[0].mxu0
        %1698 = vmatprep.mubr.bf16.mxu0 %v1487
        %1699 = vmatmul.mubr.bf16.gmra.mrb[0].mxu0 %v1486
        %v1700 = vpop.f32.mrb[0].mxu0
        %v1701 = vadd.f32 %v1545, %v1700
        %v1702 = vpop.f32.mrb[0].mxu0
        %v1703 = vpop.f32.mrb[0].mxu0
        %v1704 = vadd.f32 %v1545, %v1703
        %v1705 = vpop.f32.mrb[0].mxu0
        %1706 = vmatprep.mubr.bf16.mxu0 %v1489
        %1707 = vmatmul.mubr.bf16.gmra.mrb[0].mxu0 %v1488
        %v1708 = vpop.f32.mrb[0].mxu0
        %v1709 = vadd.f32 %v1545, %v1708
        %v1710 = vpop.f32.mrb[0].mxu0
        %v1711 = vpop.f32.mrb[0].mxu0
        %v1712 = vadd.f32 %v1545, %v1711
        %v1713 = vpop.f32.mrb[0].mxu0
        %1714 = vmatprep.mubr.bf16.mxu0 %v1491
        %1715 = vmatmul.mubr.bf16.gmra.mrb[0].mxu0 %v1490
        %v1716 = vpop.f32.mrb[0].mxu0
        %v1717 = vadd.f32 %v1545, %v1716
        %v1718 = vpop.f32.mrb[0].mxu0
        %v1719 = vpop.f32.mrb[0].mxu0
        %v1720 = vadd.f32 %v1545, %v1719
        %v1721 = vpop.f32.mrb[0].mxu0
        %1722 = vmatprep.mubr.bf16.mxu0 %v1493
        %1723 = vmatmul.mubr.bf16.gmra.mrb[0].mxu0 %v1492
        %v1724 = vpop.f32.mrb[0].mxu0
        %v1725 = vadd.f32 %v1545, %v1724
        %v1726 = vpop.f32.mrb[0].mxu0
        %v1727 = vpop.f32.mrb[0].mxu0
        %v1728 = vadd.f32 %v1545, %v1727
        %v1729 = vpop.f32.mrb[0].mxu0
        %1730 = vmatprep.mubr.bf16.mxu0 %v1495
        %1731 = vmatmul.mubr.bf16.gmra.mrb[0].mxu0 %v1494
        %v1732 = vpop.f32.mrb[0].mxu0
        %v1733 = vadd.f32 %v1545, %v1732
        %v1734 = vpop.f32.mrb[0].mxu0
        %v1735 = vpop.f32.mrb[0].mxu0
        %v1736 = vadd.f32 %v1545, %v1735
        %v1737 = vpop.f32.mrb[0].mxu0
        %1738 = vmatprep.mubr.bf16.mxu0 %v1497
        %1739 = vmatmul.mubr.bf16.gmra.mrb[0].mxu0 %v1496
        %v1740 = vpop.f32.mrb[0].mxu0
        %v1741 = vadd.f32 %v1545, %v1740
        %v1742 = vpop.f32.mrb[0].mxu0
        %v1743 = vpop.f32.mrb[0].mxu0
        %v1744 = vadd.f32 %v1545, %v1743
        %v1745 = vpop.f32.mrb[0].mxu0
        %1746 = vmatprep.mubr.bf16.mxu0 %v1499
        %1747 = vmatmul.mubr.bf16.gmra.mrb[0].mxu0 %v1498
        %v1748 = vpop.f32.mrb[0].mxu0
        %v1749 = vadd.f32 %v1545, %v1748
        %v1750 = vpop.f32.mrb[0].mxu0
        %v1751 = vpop.f32.mrb[0].mxu0
        %v1752 = vadd.f32 %v1545, %v1751
        %v1753 = vpop.f32.mrb[0].mxu0
        %1754 = vmatprep.mubr.bf16.mxu0 %v1501
        %1755 = vmatmul.mubr.bf16.gmra.mrb[0].mxu0 %v1500
        %v1756 = vpop.f32.mrb[0].mxu0
        %v1757 = vadd.f32 %v1545, %v1756
        %v1758 = vpop.f32.mrb[0].mxu0
        %v1759 = vpop.f32.mrb[0].mxu0
        %v1760 = vadd.f32 %v1545, %v1759
        %v1761 = vpop.f32.mrb[0].mxu0
        %1762 = vmatprep.mubr.bf16.mxu0 %v1503
        %1763 = vmatmul.mubr.bf16.gmra.mrb[0].mxu0 %v1502
        %v1764 = vpop.f32.mrb[0].mxu0
        %v1765 = vadd.f32 %v1545, %v1764
        %v1766 = vpop.f32.mrb[0].mxu0
        %v1767 = vpop.f32.mrb[0].mxu0
        %v1768 = vadd.f32 %v1545, %v1767
        %v1769 = vpop.f32.mrb[0].mxu0
        %1770 = vmatprep.mubr.bf16.mxu0 %v1505
        %1771 = vmatmul.mubr.bf16.gmra.mrb[0].mxu0 %v1504
        %v1772 = vpop.f32.mrb[0].mxu0
        %v1773 = vadd.f32 %v1545, %v1772
        %v1774 = vpop.f32.mrb[0].mxu0
        %v1775 = vpop.f32.mrb[0].mxu0
        %v1776 = vadd.f32 %v1545, %v1775
        %v1777 = vpop.f32.mrb[0].mxu0
        %1778 = vmatprep.mubr.bf16.mxu0 %v1507
        %1779 = vmatmul.mubr.bf16.gmra.mrb[0].mxu0 %v1506
        %v1780 = vpop.f32.mrb[0].mxu0
        %v1781 = vadd.f32 %v1545, %v1780
        %v1782 = vpop.f32.mrb[0].mxu0
        %v1783 = vpop.f32.mrb[0].mxu0
        %v1784 = vadd.f32 %v1545, %v1783
        %v1785 = vpop.f32.mrb[0].mxu0
        %1786 = vmatprep.mubr.bf16.mxu0 %v1509
        %1787 = vmatmul.mubr.bf16.gmra.mrb[0].mxu0 %v1508
        %v1788 = vpop.f32.mrb[0].mxu0
        %v1789 = vadd.f32 %v1545, %v1788
        %v1790 = vpop.f32.mrb[0].mxu0
        %v1791 = vpop.f32.mrb[0].mxu0
        %v1792 = vadd.f32 %v1545, %v1791
        %v1793 = vpop.f32.mrb[0].mxu0
        %1794 = vmatprep.mubr.bf16.mxu0 %v1511
        %1795 = vmatmul.mubr.bf16.gmra.mrb[0].mxu0 %v1510
        %v1796 = vpop.f32.mrb[0].mxu0
        %v1797 = vadd.f32 %v1545, %v1796
        %v1798 = vpop.f32.mrb[0].mxu0
        %v1799 = vpop.f32.mrb[0].mxu0
        %v1800 = vadd.f32 %v1545, %v1799
        %v1801 = vpop.f32.mrb[0].mxu0
        %1802 = vdwg.mxu0
        %vm1803 = vcmask 64512
        %1804 = vst.msk [vmem:[%s315] sm:$0xff] %vm1803, %v1677
        %1805 = vst.msk [vmem:[%s315 + $0x8] sm:$0xff] %vm1803, %v1680
        %1806 = vst.msk [vmem:[%s315 + $0x10] sm:$0xff] %vm1803, %v1685
        %1807 = vst.msk [vmem:[%s315 + $0x18] sm:$0xff] %vm1803, %v1688
        %1808 = vst.msk [vmem:[%s315 + $0x20] sm:$0xff] %vm1803, %v1693
        %1809 = vst.msk [vmem:[%s315 + $0x28] sm:$0xff] %vm1803, %v1696
        %1810 = vst.msk [vmem:[%s315 + $0x30] sm:$0xff] %vm1803, %v1701
        %1811 = vst.msk [vmem:[%s315 + $0x38] sm:$0xff] %vm1803, %v1704
        %1812 = vst.msk [vmem:[%s315 + $0x40] sm:$0xff] %vm1803, %v1709
        %1813 = vst.msk [vmem:[%s315 + $0x48] sm:$0xff] %vm1803, %v1712
        %1814 = vst.msk [vmem:[%s315 + $0x50] sm:$0xff] %vm1803, %v1717
        %1815 = vst.msk [vmem:[%s315 + $0x58] sm:$0xff] %vm1803, %v1720
        %1816 = vst.msk [vmem:[%s315 + $0x60] sm:$0xff] %vm1803, %v1725
        %1817 = vst.msk [vmem:[%s315 + $0x68] sm:$0xff] %vm1803, %v1728
        %1818 = vst.msk [vmem:[%s315 + $0x70] sm:$0xff] %vm1803, %v1733
        %1819 = vst.msk [vmem:[%s315 + $0x78] sm:$0xff] %vm1803, %v1736
        %1820 = vst.msk [vmem:[%s315 + $0x80] sm:$0xff] %vm1803, %v1741
        %1821 = vst.msk [vmem:[%s315 + $0x88] sm:$0xff] %vm1803, %v1744
        %1822 = vst.msk [vmem:[%s315 + $0x90] sm:$0xff] %vm1803, %v1749
        %1823 = vst.msk [vmem:[%s315 + $0x98] sm:$0xff] %vm1803, %v1752
        %1824 = vst.msk [vmem:[%s315 + $0xa0] sm:$0xff] %vm1803, %v1757
        %1825 = vst.msk [vmem:[%s315 + $0xa8] sm:$0xff] %vm1803, %v1760
        %1826 = vst.msk [vmem:[%s315 + $0xb0] sm:$0xff] %vm1803, %v1765
        %1827 = vst.msk [vmem:[%s315 + $0xb8] sm:$0xff] %vm1803, %v1768
        %1828 = vst.msk [vmem:[%s315 + $0xc0] sm:$0xff] %vm1803, %v1773
        %1829 = vst.msk [vmem:[%s315 + $0xc8] sm:$0xff] %vm1803, %v1776
        %1830 = vst.msk [vmem:[%s315 + $0xd0] sm:$0xff] %vm1803, %v1781
        %1831 = vst.msk [vmem:[%s315 + $0xd8] sm:$0xff] %vm1803, %v1784
        %1832 = vst.msk [vmem:[%s315 + $0xe0] sm:$0xff] %vm1803, %v1789
        %1833 = vst.msk [vmem:[%s315 + $0xe8] sm:$0xff] %vm1803, %v1792
        %1834 = vst.msk [vmem:[%s315 + $0xf0] sm:$0xff] %vm1803, %v1797
        %1835 = vst.msk [vmem:[%s315 + $0xf8] sm:$0xff] %vm1803, %v1800
        %s1836 = smul.u32 32, %s23
        %p1837 = scmp.lt.s32.totalorder %s1836, 63
        %s1838 = scalar_select %p1837, %s1836, 63
        %s1839 = smul.addr %s1838, 8
        %s1840 = scalar_lea.vmem %s7, %s1839
        // Predicated region
        $region57: #{tpu_custom_call.1} parent=47 // pred_check
          %p1841 = pneg %p193
        $region58: #{tpu_custom_call.1} parent=47 // pred_check_branch
          %1843 = sbr.rel (%p1841) target = $region60
        $region59: #{tpu_custom_call.1} parent=47 // pred_region
          %s1844 = smul.u32 32, %s23
        $region60: #{tpu_custom_call.1} parent=47 // pred_fallthru
          _
      $region48: #{tpu_custom_call.1} parent=5 // pred_fallthru
        _
      %p1845 = scmp.le.s32.totalorder 2, %s18
      // Predicated region
      $region61: #{tpu_custom_call.1} parent=5 // pred_check
        %p1846 = pneg %p1845
      $region62: #{tpu_custom_call.1} parent=5 // pred_check_branch
        %1848 = sbr.rel (%p1846) target = $region64
      $region63: #{tpu_custom_call.1} parent=5 // pred_region
        %s1849 = ssub.s32 %s18, 2
        // Predicated region
        $region65: #{tpu_custom_call.1} parent=63 // pred_check
          %p1850 = pneg %p199
        $region66: #{tpu_custom_call.1} parent=63 // pred_check_branch
          %1852 = sbr.rel (%p1850) target = $region68
        $region67: #{tpu_custom_call.1} parent=63 // pred_region
          %s1853 = smul.u32 32, %s24
          %p1854 = scmp.lt.s32.totalorder %s1853, 63
          %s1855 = scalar_select %p1854, %s1853, 63
          %s1856 = smul.addr %s1855, 8
          %s1857 = scalar_lea.vmem %s7, %s1856
        $region68: #{tpu_custom_call.1} parent=63 // pred_fallthru
          _
      $region64: #{tpu_custom_call.1} parent=5 // pred_fallthru
        _
    $region6: #{tpu_custom_call.1} parent=1 // loop_footer
      %s22 = sadd.s32 1, %s18
    $region7: #{tpu_custom_call.1} parent=1 // loop_footer_branch
      %17 = sbr.rel target = $region3
    $region8: #{tpu_custom_call.1} parent=1 // loop_exit
      _
    %1858 = vsyncpa [#allocation4], 1
    %s1859 = scalar_lea.sflag [#allocation4], 1
    %1860 = vsyncpa %s1859, 1
    %1861 = vsyncpa [#allocation6], 1

</llo_original>
